<compile_context>
chip_gen: v6e
topology: v6e:2x2x1
jax: 0.10.0
libtpu: 0.0.40
codegen_flags: <defaults>
</compile_context>

<pallas_src>
import functools

import jax
import jax.numpy as jnp
from jax import lax
from jax.experimental import pallas as pl
from jax.experimental.pallas import tpu as pltpu

LN_EPS = 1e-5       # torch.nn.LayerNorm default eps
LANE = 128          # TPU lane width
SUBLANE = 8
ROW_TILE = 256      # node-row tile used to stream the adjacency


def _round_up(v, m):
    return (v + m - 1) // m * m


def _norm_gnn_kernel(x_in_ref, a_ref, w_in_ref, b_in_ref,
                     w_stk_ref, b_stk_ref, ln_g_ref, ln_b_ref,
                     w_out_ref, b_out_ref,
                     x_out_ref, y_out_ref,
                     xbuf, x2buf,
                     *, num_blocks, residual, mid, tile_n, mm_dtype):
    f32 = jnp.float32
    k = pl.program_id(0)                      # phase: 0 = inLayer, 1..nb = GNN blocks
    i = pl.program_id(1)                      # node row tile
    n_p = xbuf.shape[0] // 2                  # padded node count (static)
    mid_p = xbuf.shape[1]                     # padded hidden width (static)
    row0 = pl.multiple_of(i * tile_n, tile_n)
    rows = pl.ds(row0, tile_n)

    def mm(a, b):                             # MXU dot, f32 accumulation
        return jnp.dot(a.astype(mm_dtype), b.astype(mm_dtype),
                       preferred_element_type=f32)

    # ---- phase 0: inLayer + ReLU; seed X (slot 0) and the residual buffer ----
    @pl.when(k == 0)
    def _prologue():
        h = jnp.maximum(mm(x_in_ref[...], w_in_ref[...]) + b_in_ref[...], 0.0)
        xbuf[rows, :] = h
        x2buf[rows, :] = h

    # ---- phases 1..num_blocks: GraphConv -> LayerNorm -> (+res) -> ReLU ------
    @pl.when(k > 0)
    def _gnn_block():
        rslot = lax.rem(k - 1, 2)             # previous layer's X half
        wslot = lax.rem(k, 2)                 # this layer's X half
        r_all = pl.multiple_of(rslot * n_p, tile_n)
        r_row = pl.multiple_of(rslot * n_p + row0, tile_n)
        w_row = pl.multiple_of(wslot * n_p + row0, tile_n)

        x_all = xbuf[pl.ds(r_all, n_p), :]       # (n_p, mid_p): prev layer, all nodes
        x_row = xbuf[pl.ds(r_row, tile_n), :]    # this tile's rows, prev layer

        # GraphConv("add"): lin_rel(A @ x) + lin_root(x), fused as one K=2*mid dot.
        agg = mm(a_ref[...], x_all)
        h = mm(jnp.concatenate([agg, x_row], axis=-1), w_stk_ref[...]) \
            + b_stk_ref[...]

        # LayerNorm over the true `mid` channels (padded lanes masked to zero).
        inv_mid = 1.0 / float(mid)
        mean = jnp.sum(h, axis=-1, keepdims=True) * inv_mid   # pad lanes of h are 0
        d = h - mean
        if mid != mid_p:
            cmask = (lax.broadcasted_iota(jnp.int32, (1, mid_p), 1) < mid
                     ).astype(f32)
            d = d * cmask
        var = jnp.sum(d * d, axis=-1, keepdims=True) * inv_mid
        h = d * lax.rsqrt(var + LN_EPS) * ln_g_ref[...] + ln_b_ref[...]

        # torch schedule (module index i % 6 == 5): residual add before the ReLU
        # of every odd GNN block; x2 refreshed right after that ReLU.
        if residual:
            is_res = jnp.logical_and(k >= 2, lax.rem(k, 2) == 0)
            h = jnp.maximum(h + jnp.where(is_res, x2buf[rows, :], 0.0), 0.0)

            @pl.when(is_res)
            def _update_x2():
                x2buf[rows, :] = h
        else:
            h = jnp.maximum(h, 0.0)

        xbuf[pl.ds(w_row, tile_n), :] = h

        # ---- epilogue: final hidden state + outLayer for this row tile -------
        @pl.when(k == num_blocks)
        def _epilogue():
            x_out_ref[...] = h.astype(x_out_ref.dtype)
            y_out_ref[...] = (mm(h, w_out_ref[...]) + b_out_ref[...]
                              ).astype(y_out_ref.dtype)


def norm_gnn_forward(x, edge, edge_weight, params, *, residual=True,
                     mm_dtype=jnp.float32):
    """normGNN forward as one Pallas TPU kernel. Returns (hidden_x, output)."""
    n, in_c = x.shape
    num_blocks = params["w_rel"].shape[0]
    mid = params["w_in"].shape[1]
    out_c = params["w_out"].shape[1]
    assert num_blocks >= 1, "numlayer must be >= 2"

    f32 = jnp.float32
    in_p = _round_up(in_c, LANE)
    mid_p = _round_up(mid, LANE)
    out_p = _round_up(out_c, LANE)

    n_p = _round_up(n, SUBLANE)
    if n_p <= ROW_TILE:
        tile_n = n_p
    else:
        tile_n = ROW_TILE
        n_p = _round_up(n, ROW_TILE)
    n_tiles = n_p // tile_n

    # -- glue: densify edge list into A[dst, src] (GraphConv "add" aggregation)
    #    via a one-hot matmul (MXU-friendly) instead of a serial scatter-add.
    # TODO(synk): hoist/reuse A across calls when the graph is static.
    if edge_weight is None:
        edge_weight = jnp.ones((edge.shape[1],), f32)
    w_e = edge_weight.astype(f32)
    src_oh = jax.nn.one_hot(edge[0], n_p, dtype=f32)          # (E, n_p)
    dst_oh = jax.nn.one_hot(edge[1], n_p, dtype=f32)          # (E, n_p)
    adj = jnp.dot((dst_oh * w_e[:, None]).T, src_oh).astype(mm_dtype)

    # -- lane-dense zero padding of activations and parameters -----------------
    def pad2(a, r, c):
        return jnp.pad(a.astype(f32), ((0, r - a.shape[0]), (0, c - a.shape[1])))

    def pad3(a, r, c):
        return jnp.pad(a.astype(f32),
                       ((0, 0), (0, r - a.shape[1]), (0, c - a.shape[2])))

    x_p = pad2(x, n_p, in_p)
    w_in = pad2(params["w_in"], in_p, mid_p)
    b_in = pad2(params["b_in"], 1, mid_p)
    # stacked GraphConv weight [[W_rel],[W_root]]: (nb, 2*mid_p, mid_p)
    w_stk = jnp.concatenate([pad3(params["w_rel"], mid_p, mid_p),
                             pad3(params["w_root"], mid_p, mid_p)], axis=1)
    b_stk = pad3(params["b_rel"], 1, mid_p)
    ln_g = pad3(params["ln_g"], 1, mid_p)     # pad lanes -> gamma/beta = 0
    ln_b = pad3(params["ln_b"], 1, mid_p)
    w_out = pad2(params["w_out"], mid_p, out_p)
    b_out = pad2(params["b_out"], 1, out_p)

    grid = (num_blocks + 1, n_tiles)

    lay_idx = lambda k, i: (jnp.maximum(k - 1, 0), 0, 0)
    in_specs = [
        # node features: needed only in phase 0; pin to tile 0 afterwards so
        # Pallas doesn't re-stream them every phase.
        pl.BlockSpec((tile_n, in_p), lambda k, i: (jnp.where(k == 0, i, 0), 0)),
        # adjacency rows: streamed per row tile every phase (used for k >= 1)
        pl.BlockSpec((tile_n, n_p), lambda k, i: (i, 0)),
        pl.BlockSpec((in_p, mid_p), lambda k, i: (0, 0)),
        pl.BlockSpec((1, mid_p), lambda k, i: (0, 0)),
        # per-layer params: stream layer k-1 (double-buffered / prefetched)
        pl.BlockSpec((None, 2 * mid_p, mid_p), lay_idx),
        pl.BlockSpec((None, 1, mid_p), lay_idx),
        pl.BlockSpec((None, 1, mid_p), lay_idx),
        pl.BlockSpec((None, 1, mid_p), lay_idx),
        pl.BlockSpec((mid_p, out_p), lambda k, i: (0, 0)),
        pl.BlockSpec((1, out_p), lambda k, i: (0, 0)),
    ]
    # outputs: only written in the final phase; pin block 0 beforehand so the
    # pipeline never writes back uninitialized blocks during GNN phases.
    out_idx = lambda k, i: (jnp.where(k == num_blocks, i, 0), 0)
    out_specs = (
        pl.BlockSpec((tile_n, mid_p), out_idx),
        pl.BlockSpec((tile_n, out_p), out_idx),
    )
    out_shapes = (jax.ShapeDtypeStruct((n_p, mid_p), x.dtype),
                  jax.ShapeDtypeStruct((n_p, out_p), x.dtype))

    scratch_shapes = [
        pltpu.VMEM((2 * n_p, mid_p), f32),    # X, ping-pong halves by layer parity
        pltpu.VMEM((n_p, mid_p), f32),        # residual X2
    ]

    # rough VMEM budget (scratch + double-buffered streamed blocks) + headroom
    est = 4 * (3 * n_p * mid_p) + 2 * 4 * (
        tile_n * n_p + tile_n * in_p + in_p * mid_p + 2 * mid_p * mid_p
        + 4 * mid_p + mid_p * out_p + out_p + tile_n * mid_p + tile_n * out_p)
    vmem_limit = int(min(64 * 2**20, max(32 * 2**20, 2 * est)))

    kern = functools.partial(_norm_gnn_kernel, num_blocks=num_blocks,
                             residual=residual, mid=mid, tile_n=tile_n,
                             mm_dtype=mm_dtype)

    x_hid_p, y_p = pl.pallas_call(
        kern,
        grid=grid,
        in_specs=in_specs,
        out_specs=out_specs,
        out_shape=out_shapes,
        scratch_shapes=scratch_shapes,
        compiler_params=pltpu.CompilerParams(
            # layer axis is sequential; row-tile axis kept "arbitrary" because X
            # lives in per-core VMEM scratch.
            # TODO(synk): v7x megacore split of the row axis needs X in
            # VMEM_SHARED/CMEM (or an HBM round trip per layer).
            dimension_semantics=("arbitrary", "arbitrary"),
            vmem_limit_bytes=vmem_limit),
    )(x_p, adj, w_in, b_in, w_stk, b_stk, ln_g, ln_b, w_out, b_out)

    return x_hid_p[:n, :mid], y_p[:n, :out_c]


def norm_gnn_reference(x, edge, edge_weight, params, *, residual=True):
    """Pure-JAX reference mirroring the PyTorch forward semantics."""
    n = x.shape[0]
    hp = jax.lax.Precision.HIGHEST
    if edge_weight is None:
        edge_weight = jnp.ones((edge.shape[1],), x.dtype)
    adj = jnp.zeros((n, n), x.dtype).at[edge[1], edge[0]].add(edge_weight)
    x = jax.nn.relu(jnp.dot(x, params["w_in"], precision=hp) + params["b_in"])
    x2 = x
    for k in range(params["w_rel"].shape[0]):
        agg = jnp.dot(adj, x, precision=hp)
        x = (jnp.dot(agg, params["w_rel"][k], precision=hp) + params["b_rel"][k]
             + jnp.dot(x, params["w_root"][k], precision=hp))
        mean = x.mean(-1, keepdims=True)
        var = jnp.square(x - mean).mean(-1, keepdims=True)
        x = (x - mean) / jnp.sqrt(var + LN_EPS) * params["ln_g"][k] + params["ln_b"][k]
        if residual and k % 2 == 1:
            x = x + x2
        x = jax.nn.relu(x)
        if residual and k % 2 == 1:
            x2 = x
    return x, jnp.dot(x, params["w_out"], precision=hp) + params["b_out"]


def init_params(key, numlayer, inchannel, midchannel, outchannel):
    """Deterministic synthetic parameters (weights stored [in, out])."""
    nb = numlayer - 1
    ks = jax.random.split(key, 7)
    s = 0.1
    return {
        "w_in": s * jax.random.normal(ks[0], (inchannel, midchannel), jnp.float32),
        "b_in": s * jax.random.normal(ks[1], (1, midchannel), jnp.float32),
        "w_rel": s * jax.random.normal(ks[2], (nb, midchannel, midchannel), jnp.float32),
        "b_rel": s * jax.random.normal(ks[3], (nb, 1, midchannel), jnp.float32),
        "w_root": s * jax.random.normal(ks[4], (nb, midchannel, midchannel), jnp.float32),
        "ln_g": jnp.ones((nb, 1, midchannel), jnp.float32),   # LayerNorm weight init
        "ln_b": jnp.zeros((nb, 1, midchannel), jnp.float32),  # LayerNorm bias init
        "w_out": s * jax.random.normal(ks[5], (midchannel, outchannel), jnp.float32),
        "b_out": s * jax.random.normal(ks[6], (1, outchannel), jnp.float32),
    }


if __name__ == "__main__":
    key = jax.random.PRNGKey(0)
    k_x, k_e, k_w, k_p = jax.random.split(key, 4)

    numlayer, inchannel, midchannel, outchannel = 3, 8, 32, 8
    n_nodes, n_edges = 16, 48

    x = jax.random.normal(k_x, (n_nodes, inchannel), jnp.float32)
    edge = jax.random.randint(k_e, (2, n_edges), 0, n_nodes, jnp.int32)
    edge_weight = jax.random.uniform(k_w, (n_edges,), jnp.float32)
    params = init_params(k_p, numlayer, inchannel, midchannel, outchannel)

    x_hidden, output = norm_gnn_forward(x, edge, edge_weight, params)
    jax.block_until_ready((x_hidden, output))

    x_ref, out_ref = norm_gnn_reference(x, edge, edge_weight, params)
    assert x_hidden.shape == x_ref.shape and output.shape == out_ref.shape
    # tolerance covers TPU matmul pass-precision differences (f32 vs bf16-pass)
    assert jnp.allclose(x_hidden, x_ref, atol=2e-2, rtol=2e-2)
    assert jnp.allclose(output, out_ref, atol=2e-2, rtol=2e-2)

    print("KERNEL_OK")
</pallas_src>

<mosaic_0001>
module attributes {stable_mosaic.version = 11 : i64} {
  func.func @_norm_gnn_kernel(%arg0: i32, %arg1: i32, %arg2: memref<16x128xf32, #tpu.memory_space<vmem>>, %arg3: memref<16x16xf32, #tpu.memory_space<vmem>>, %arg4: memref<128x128xf32, #tpu.memory_space<vmem>>, %arg5: memref<1x128xf32, #tpu.memory_space<vmem>>, %arg6: memref<1x256x128xf32, #tpu.memory_space<vmem>>, %arg7: memref<1x1x128xf32, #tpu.memory_space<vmem>>, %arg8: memref<1x1x128xf32, #tpu.memory_space<vmem>>, %arg9: memref<1x1x128xf32, #tpu.memory_space<vmem>>, %arg10: memref<128x128xf32, #tpu.memory_space<vmem>>, %arg11: memref<1x128xf32, #tpu.memory_space<vmem>>, %arg12: memref<16x128xf32, #tpu.memory_space<vmem>>, %arg13: memref<16x128xf32, #tpu.memory_space<vmem>>, %arg14: memref<32x128xf32, #tpu.memory_space<vmem>>, %arg15: memref<16x128xf32, #tpu.memory_space<vmem>>) attributes {dimension_semantics = [#tpu.dimension_semantics<arbitrary>, #tpu.dimension_semantics<arbitrary>], iteration_bounds = array<i64: 3, 1>, scalar_prefetch = 0 : i64, scratch_operands = 2 : i64, tpu.core_type = #tpu.core_type<tc>, window_params = [{transform_indices = @transform_0, window_bounds = array<i64: 16, 128>}, {transform_indices = @transform_1, window_bounds = array<i64: 16, 16>}, {pipeline_mode = #tpu.pipeline_mode<synchronous>, transform_indices = @transform_2, window_bounds = array<i64: 128, 128>}, {pipeline_mode = #tpu.pipeline_mode<synchronous>, transform_indices = @transform_3, window_bounds = array<i64: 1, 128>}, {transform_indices = @transform_4, window_bounds = array<i64: 1, 256, 128>}, {transform_indices = @transform_5, window_bounds = array<i64: 1, 1, 128>}, {transform_indices = @transform_6, window_bounds = array<i64: 1, 1, 128>}, {transform_indices = @transform_7, window_bounds = array<i64: 1, 1, 128>}, {pipeline_mode = #tpu.pipeline_mode<synchronous>, transform_indices = @transform_8, window_bounds = array<i64: 128, 128>}, {pipeline_mode = #tpu.pipeline_mode<synchronous>, transform_indices = @transform_9, window_bounds = array<i64: 1, 128>}, {transform_indices = @transform_10, window_bounds = array<i64: 16, 128>}, {transform_indices = @transform_11, window_bounds = array<i64: 16, 128>}]} {
    %c16_i32 = arith.constant 16 : i32
    %0 = arith.muli %arg1, %c16_i32 : i32
    %1 = tpu.assume_multiple %0, 16 : i32
    %c0_i32 = arith.constant 0 : i32
    %2 = arith.cmpi eq, %arg0, %c0_i32 : i32
    %3 = arith.extui %2 : i1 to i32
    %c0_i32_0 = arith.constant 0 : i32
    %4 = arith.cmpi ne, %3, %c0_i32_0 : i32
    scf.if %4 {
      %c0 = arith.constant 0 : index
      %c0_3 = arith.constant 0 : index
      %8 = vector.load %arg2[%c0, %c0_3] : memref<16x128xf32, #tpu.memory_space<vmem>>, vector<16x128xf32>
      %c0_4 = arith.constant 0 : index
      %c0_5 = arith.constant 0 : index
      %9 = vector.load %arg4[%c0_4, %c0_5] : memref<128x128xf32, #tpu.memory_space<vmem>>, vector<128x128xf32>
      %cst = arith.constant dense<0.000000e+00> : vector<16x128xf32>
      %10 = tpu.matmul %8, %9, %cst {dimension_numbers = #tpu.dot_dimension_numbers<[1], [0], [0], [1], [0, 0, 1, 1], [], []>} : vector<16x128xf32>, vector<128x128xf32>, vector<16x128xf32> -> vector<16x128xf32>
      %c0_6 = arith.constant 0 : index
      %c0_7 = arith.constant 0 : index
      %11 = vector.load %arg5[%c0_6, %c0_7] : memref<1x128xf32, #tpu.memory_space<vmem>>, vector<1x128xf32>
      %12 = vector.broadcast %11 : vector<1x128xf32> to vector<16x128xf32>
      %13 = arith.addf %10, %12 : vector<16x128xf32>
      %cst_8 = arith.constant 0.000000e+00 : f32
      %14 = vector.broadcast %cst_8 : f32 to vector<16x128xf32>
      %15 = arith.maximumf %13, %14 : vector<16x128xf32>
      %16 = arith.index_cast %1 : i32 to index
      %c0_9 = arith.constant 0 : index
      %17 = vector.load %arg14[%16, %c0_9] : memref<32x128xf32, #tpu.memory_space<vmem>>, vector<16x128xf32>
      tpu.vector_store %arg14[%16, %c0_9], %15 {strides = array<i32>} : memref<32x128xf32, #tpu.memory_space<vmem>>, vector<16x128xf32>,
      %18 = arith.index_cast %1 : i32 to index
      %c0_10 = arith.constant 0 : index
      %19 = vector.load %arg15[%18, %c0_10] : memref<16x128xf32, #tpu.memory_space<vmem>>, vector<16x128xf32>
      tpu.vector_store %arg15[%18, %c0_10], %15 {strides = array<i32>} : memref<16x128xf32, #tpu.memory_space<vmem>>, vector<16x128xf32>,
    } else {
    }
    %c0_i32_1 = arith.constant 0 : i32
    %5 = arith.cmpi sgt, %arg0, %c0_i32_1 : i32
    %6 = arith.extui %5 : i1 to i32
    %c0_i32_2 = arith.constant 0 : i32
    %7 = arith.cmpi ne, %6, %c0_i32_2 : i32
    scf.if %7 {
      %c1_i32 = arith.constant 1 : i32
      %8 = arith.subi %arg0, %c1_i32 : i32
      %c2_i32 = arith.constant 2 : i32
      %9 = arith.remsi %8, %c2_i32 : i32
      %c2_i32_3 = arith.constant 2 : i32
      %10 = arith.remsi %arg0, %c2_i32_3 : i32
      %c16_i32_4 = arith.constant 16 : i32
      %11 = arith.muli %9, %c16_i32_4 : i32
      %12 = tpu.assume_multiple %11, 16 : i32
      %c16_i32_5 = arith.constant 16 : i32
      %13 = arith.muli %9, %c16_i32_5 : i32
      %14 = arith.addi %13, %1 : i32
      %15 = tpu.assume_multiple %14, 16 : i32
      %c16_i32_6 = arith.constant 16 : i32
      %16 = arith.muli %10, %c16_i32_6 : i32
      %17 = arith.addi %16, %1 : i32
      %18 = tpu.assume_multiple %17, 16 : i32
      %19 = arith.index_cast %12 : i32 to index
      %c0 = arith.constant 0 : index
      %20 = vector.load %arg14[%19, %c0] : memref<32x128xf32, #tpu.memory_space<vmem>>, vector<16x128xf32>
      %21 = arith.index_cast %15 : i32 to index
      %c0_7 = arith.constant 0 : index
      %22 = vector.load %arg14[%21, %c0_7] : memref<32x128xf32, #tpu.memory_space<vmem>>, vector<16x128xf32>
      %c0_8 = arith.constant 0 : index
      %c0_9 = arith.constant 0 : index
      %23 = vector.load %arg3[%c0_8, %c0_9] : memref<16x16xf32, #tpu.memory_space<vmem>>, vector<16x16xf32>
      %cst = arith.constant dense<0.000000e+00> : vector<16x128xf32>
      %24 = tpu.matmul %23, %20, %cst {dimension_numbers = #tpu.dot_dimension_numbers<[1], [0], [0], [1], [0, 0, 1, 1], [], []>} : vector<16x16xf32>, vector<16x128xf32>, vector<16x128xf32> -> vector<16x128xf32>
      %25 = tpu.concatenate %24, %22 in 1 : vector<16x128xf32>, vector<16x128xf32> -> vector<16x256xf32>
      %c0_10 = arith.constant 0 : index
      %c0_11 = arith.constant 0 : index
      %c0_12 = arith.constant 0 : index
      %26 = vector.load %arg6[%c0_10, %c0_11, %c0_12] : memref<1x256x128xf32, #tpu.memory_space<vmem>>, vector<1x256x128xf32>
      %27 = vector.shape_cast %26 : vector<1x256x128xf32> to vector<256x128xf32>
      %cst_13 = arith.constant dense<0.000000e+00> : vector<16x128xf32>
      %28 = tpu.matmul %25, %27, %cst_13 {dimension_numbers = #tpu.dot_dimension_numbers<[1], [0], [0], [1], [0, 0, 1, 1], [], []>} : vector<16x256xf32>, vector<256x128xf32>, vector<16x128xf32> -> vector<16x128xf32>
      %c0_14 = arith.constant 0 : index
      %c0_15 = arith.constant 0 : index
      %c0_16 = arith.constant 0 : index
      %29 = vector.load %arg7[%c0_14, %c0_15, %c0_16] : memref<1x1x128xf32, #tpu.memory_space<vmem>>, vector<1x1x128xf32>
      %30 = vector.shape_cast %29 : vector<1x1x128xf32> to vector<1x128xf32>
      %31 = vector.broadcast %30 : vector<1x128xf32> to vector<16x128xf32>
      %32 = arith.addf %28, %31 : vector<16x128xf32>
      %cst_17 = arith.constant dense<0.000000e+00> : vector<16xf32>
      %33 = vector.multi_reduction <add>, %32, %cst_17 [1] : vector<16x128xf32> to vector<16xf32>
      %34 = vector.shape_cast %33 : vector<16xf32> to vector<16x1xf32>
      %cst_18 = arith.constant 3.125000e-02 : f32
      %35 = vector.broadcast %cst_18 : f32 to vector<16x1xf32>
      %36 = arith.mulf %34, %35 : vector<16x1xf32>
      %37 = vector.broadcast %36 : vector<16x1xf32> to vector<16x128xf32>
      %38 = arith.subf %32, %37 : vector<16x128xf32>
      %39 = tpu.iota {dimensions = array<i32: 1>} : vector<1x128xi32>
      %c32_i32 = arith.constant 32 : i32
      %40 = vector.broadcast %c32_i32 : i32 to vector<1x128xi32>
      %41 = arith.cmpi slt, %39, %40 : vector<1x128xi32>
      %42 = arith.extui %41 : vector<1x128xi1> to vector<1x128xi32>
      %43 = arith.sitofp %42 : vector<1x128xi32> to vector<1x128xf32>
      %44 = vector.broadcast %43 : vector<1x128xf32> to vector<16x128xf32>
      %45 = arith.mulf %38, %44 : vector<16x128xf32>
      %46 = arith.mulf %45, %45 : vector<16x128xf32>
      %cst_19 = arith.constant dense<0.000000e+00> : vector<16xf32>
      %47 = vector.multi_reduction <add>, %46, %cst_19 [1] : vector<16x128xf32> to vector<16xf32>
      %48 = vector.shape_cast %47 : vector<16xf32> to vector<16x1xf32>
      %cst_20 = arith.constant 3.125000e-02 : f32
      %49 = vector.broadcast %cst_20 : f32 to vector<16x1xf32>
      %50 = arith.mulf %48, %49 : vector<16x1xf32>
      %cst_21 = arith.constant 9.99999974E-6 : f32
      %51 = vector.broadcast %cst_21 : f32 to vector<16x1xf32>
      %52 = arith.addf %50, %51 : vector<16x1xf32>
      %53 = math.rsqrt %52 : vector<16x1xf32>
      %54 = vector.broadcast %53 : vector<16x1xf32> to vector<16x128xf32>
      %55 = arith.mulf %45, %54 : vector<16x128xf32>
      %c0_22 = arith.constant 0 : index
      %c0_23 = arith.constant 0 : index
      %c0_24 = arith.constant 0 : index
      %56 = vector.load %arg8[%c0_22, %c0_23, %c0_24] : memref<1x1x128xf32, #tpu.memory_space<vmem>>, vector<1x1x128xf32>
      %57 = vector.shape_cast %56 : vector<1x1x128xf32> to vector<1x128xf32>
      %58 = vector.broadcast %57 : vector<1x128xf32> to vector<16x128xf32>
      %59 = arith.mulf %55, %58 : vector<16x128xf32>
      %c0_25 = arith.constant 0 : index
      %c0_26 = arith.constant 0 : index
      %c0_27 = arith.constant 0 : index
      %60 = vector.load %arg9[%c0_25, %c0_26, %c0_27] : memref<1x1x128xf32, #tpu.memory_space<vmem>>, vector<1x1x128xf32>
      %61 = vector.shape_cast %60 : vector<1x1x128xf32> to vector<1x128xf32>
      %62 = vector.broadcast %61 : vector<1x128xf32> to vector<16x128xf32>
      %63 = arith.addf %59, %62 : vector<16x128xf32>
      %c2_i32_28 = arith.constant 2 : i32
      %64 = arith.cmpi sge, %arg0, %c2_i32_28 : i32
      %c2_i32_29 = arith.constant 2 : i32
      %65 = arith.remsi %arg0, %c2_i32_29 : i32
      %c0_i32_30 = arith.constant 0 : i32
      %66 = arith.cmpi eq, %65, %c0_i32_30 : i32
      %67 = arith.andi %64, %66 : i1
      %68 = arith.index_cast %1 : i32 to index
      %c0_31 = arith.constant 0 : index
      %69 = vector.load %arg15[%68, %c0_31] : memref<16x128xf32, #tpu.memory_space<vmem>>, vector<16x128xf32>
      %cst_32 = arith.constant 0.000000e+00 : f32
      %70 = vector.broadcast %cst_32 : f32 to vector<16x128xf32>
      %71 = arith.select %67, %69, %70 : vector<16x128xf32>
      %72 = arith.addf %63, %71 : vector<16x128xf32>
      %cst_33 = arith.constant 0.000000e+00 : f32
      %73 = vector.broadcast %cst_33 : f32 to vector<16x128xf32>
      %74 = arith.maximumf %72, %73 : vector<16x128xf32>
      %75 = arith.extui %67 : i1 to i32
      %c0_i32_34 = arith.constant 0 : i32
      %76 = arith.cmpi ne, %75, %c0_i32_34 : i32
      scf.if %76 {
        %82 = arith.index_cast %1 : i32 to index
        %c0_38 = arith.constant 0 : index
        %83 = vector.load %arg15[%82, %c0_38] : memref<16x128xf32, #tpu.memory_space<vmem>>, vector<16x128xf32>
        tpu.vector_store %arg15[%82, %c0_38], %74 {strides = array<i32>} : memref<16x128xf32, #tpu.memory_space<vmem>>, vector<16x128xf32>,
      } else {
      }
      %77 = arith.index_cast %18 : i32 to index
      %c0_35 = arith.constant 0 : index
      %78 = vector.load %arg14[%77, %c0_35] : memref<32x128xf32, #tpu.memory_space<vmem>>, vector<16x128xf32>
      tpu.vector_store %arg14[%77, %c0_35], %74 {strides = array<i32>} : memref<32x128xf32, #tpu.memory_space<vmem>>, vector<16x128xf32>,
      %c2_i32_36 = arith.constant 2 : i32
      %79 = arith.cmpi eq, %arg0, %c2_i32_36 : i32
      %80 = arith.extui %79 : i1 to i32
      %c0_i32_37 = arith.constant 0 : i32
      %81 = arith.cmpi ne, %80, %c0_i32_37 : i32
      scf.if %81 {
        %c0_38 = arith.constant 0 : index
        %c0_39 = arith.constant 0 : index
        %82 = vector.load %arg12[%c0_38, %c0_39] : memref<16x128xf32, #tpu.memory_space<vmem>>, vector<16x128xf32>
        tpu.vector_store %arg12[%c0_38, %c0_39], %74 {strides = array<i32>} : memref<16x128xf32, #tpu.memory_space<vmem>>, vector<16x128xf32>,
        %c0_40 = arith.constant 0 : index
        %c0_41 = arith.constant 0 : index
        %83 = vector.load %arg10[%c0_40, %c0_41] : memref<128x128xf32, #tpu.memory_space<vmem>>, vector<128x128xf32>
        %cst_42 = arith.constant dense<0.000000e+00> : vector<16x128xf32>
        %84 = tpu.matmul %74, %83, %cst_42 {dimension_numbers = #tpu.dot_dimension_numbers<[1], [0], [0], [1], [0, 0, 1, 1], [], []>} : vector<16x128xf32>, vector<128x128xf32>, vector<16x128xf32> -> vector<16x128xf32>
        %c0_43 = arith.constant 0 : index
        %c0_44 = arith.constant 0 : index
        %85 = vector.load %arg11[%c0_43, %c0_44] : memref<1x128xf32, #tpu.memory_space<vmem>>, vector<1x128xf32>
        %86 = vector.broadcast %85 : vector<1x128xf32> to vector<16x128xf32>
        %87 = arith.addf %84, %86 : vector<16x128xf32>
        %c0_45 = arith.constant 0 : index
        %c0_46 = arith.constant 0 : index
        %88 = vector.load %arg13[%c0_45, %c0_46] : memref<16x128xf32, #tpu.memory_space<vmem>>, vector<16x128xf32>
        tpu.vector_store %arg13[%c0_45, %c0_46], %87 {strides = array<i32>} : memref<16x128xf32, #tpu.memory_space<vmem>>, vector<16x128xf32>,
      } else {
      }
    } else {
    }
    return
  }
  func.func @transform_0(%arg0: i32, %arg1: i32) -> (i32, i32) {
    %c0_i32 = arith.constant 0 : i32
    %0 = arith.cmpi eq, %arg0, %c0_i32 : i32
    %c0_i32_0 = arith.constant 0 : i32
    %1 = arith.select %0, %arg1, %c0_i32_0 : i32
    %c0_i32_1 = arith.constant 0 : i32
    %c0_i32_2 = arith.constant 0 : i32
    return %1, %c0_i32_1 : i32, i32
  }
  func.func @transform_1(%arg0: i32, %arg1: i32) -> (i32, i32) {
    %c0_i32 = arith.constant 0 : i32
    %c0_i32_0 = arith.constant 0 : i32
    return %arg1, %c0_i32 : i32, i32
  }
  func.func @transform_2(%arg0: i32, %arg1: i32) -> (i32, i32) {
    %c0_i32 = arith.constant 0 : i32
    %c0_i32_0 = arith.constant 0 : i32
    %c0_i32_1 = arith.constant 0 : i32
    return %c0_i32, %c0_i32_0 : i32, i32
  }
  func.func @transform_3(%arg0: i32, %arg1: i32) -> (i32, i32) {
    %c0_i32 = arith.constant 0 : i32
    %c0_i32_0 = arith.constant 0 : i32
    %c0_i32_1 = arith.constant 0 : i32
    return %c0_i32, %c0_i32_0 : i32, i32
  }
  func.func @transform_4(%arg0: i32, %arg1: i32) -> (i32, i32, i32) {
    %c1_i32 = arith.constant 1 : i32
    %0 = arith.subi %arg0, %c1_i32 : i32
    %c0_i32 = arith.constant 0 : i32
    %1 = arith.maxsi %0, %c0_i32 : i32
    %c0_i32_0 = arith.constant 0 : i32
    %c0_i32_1 = arith.constant 0 : i32
    %c0_i32_2 = arith.constant 0 : i32
    return %1, %c0_i32_0, %c0_i32_1 : i32, i32, i32
  }
  func.func @transform_5(%arg0: i32, %arg1: i32) -> (i32, i32, i32) {
    %c1_i32 = arith.constant 1 : i32
    %0 = arith.subi %arg0, %c1_i32 : i32
    %c0_i32 = arith.constant 0 : i32
    %1 = arith.maxsi %0, %c0_i32 : i32
    %c0_i32_0 = arith.constant 0 : i32
    %c0_i32_1 = arith.constant 0 : i32
    %c0_i32_2 = arith.constant 0 : i32
    return %1, %c0_i32_0, %c0_i32_1 : i32, i32, i32
  }
  func.func @transform_6(%arg0: i32, %arg1: i32) -> (i32, i32, i32) {
    %c1_i32 = arith.constant 1 : i32
    %0 = arith.subi %arg0, %c1_i32 : i32
    %c0_i32 = arith.constant 0 : i32
    %1 = arith.maxsi %0, %c0_i32 : i32
    %c0_i32_0 = arith.constant 0 : i32
    %c0_i32_1 = arith.constant 0 : i32
    %c0_i32_2 = arith.constant 0 : i32
    return %1, %c0_i32_0, %c0_i32_1 : i32, i32, i32
  }
  func.func @transform_7(%arg0: i32, %arg1: i32) -> (i32, i32, i32) {
    %c1_i32 = arith.constant 1 : i32
    %0 = arith.subi %arg0, %c1_i32 : i32
    %c0_i32 = arith.constant 0 : i32
    %1 = arith.maxsi %0, %c0_i32 : i32
    %c0_i32_0 = arith.constant 0 : i32
    %c0_i32_1 = arith.constant 0 : i32
    %c0_i32_2 = arith.constant 0 : i32
    return %1, %c0_i32_0, %c0_i32_1 : i32, i32, i32
  }
  func.func @transform_8(%arg0: i32, %arg1: i32) -> (i32, i32) {
    %c0_i32 = arith.constant 0 : i32
    %c0_i32_0 = arith.constant 0 : i32
    %c0_i32_1 = arith.constant 0 : i32
    return %c0_i32, %c0_i32_0 : i32, i32
  }
  func.func @transform_9(%arg0: i32, %arg1: i32) -> (i32, i32) {
    %c0_i32 = arith.constant 0 : i32
    %c0_i32_0 = arith.constant 0 : i32
    %c0_i32_1 = arith.constant 0 : i32
    return %c0_i32, %c0_i32_0 : i32, i32
  }
  func.func @transform_10(%arg0: i32, %arg1: i32) -> (i32, i32) {
    %c2_i32 = arith.constant 2 : i32
    %0 = arith.cmpi eq, %arg0, %c2_i32 : i32
    %c0_i32 = arith.constant 0 : i32
    %1 = arith.select %0, %arg1, %c0_i32 : i32
    %c0_i32_0 = arith.constant 0 : i32
    %c0_i32_1 = arith.constant 0 : i32
    return %1, %c0_i32_0 : i32, i32
  }
  func.func @transform_11(%arg0: i32, %arg1: i32) -> (i32, i32) {
    %c2_i32 = arith.constant 2 : i32
    %0 = arith.cmpi eq, %arg0, %c2_i32 : i32
    %c0_i32 = arith.constant 0 : i32
    %1 = arith.select %0, %arg1, %c0_i32 : i32
    %c0_i32_0 = arith.constant 0 : i32
    %c0_i32_1 = arith.constant 0 : i32
    return %1, %c0_i32_0 : i32, i32
  }
}

</mosaic_0001>

<llo_original>
// kernel: tpu_custom_call.1
$region0: #{tpu_custom_call.1}
  #allocation0 [shape = 'u32[]', space=smem, size = 0x4, offset = 0x4, fixed_abs, tag = 'smem constant byte address 0x4 - core index']
  #allocation1 [shape = 'u32[144,128]{1,0:T(1,128)}', space=vmem, size = 0x12000, scoped, tag = 'internal scratch']
  #allocation2 [shape = 'f32[32,128]{1,0:T(8,128)}', space=vmem, size = 0x4000, scoped, tag = 'scratch operand']
  #allocation3 [shape = 'f32[16,128]{1,0:T(8,128)}', space=vmem, size = 0x2000, scoped, tag = 'scratch operand']
  %s0 = inlined_call_operand.hbm [shape: f32[16,128], index: 0, kind: input, shape index: {}]
  %s1 = inlined_call_operand.hbm [shape: f32[16,16], index: 1, kind: input, shape index: {}]
  %s2 = inlined_call_operand.hbm [shape: f32[128,128], index: 2, kind: input, shape index: {}]
  %s3 = inlined_call_operand.vmem [shape: f32[1,128], index: 3, kind: input, shape index: {}]
  %s4 = inlined_call_operand.hbm [shape: f32[2,256,128], index: 4, kind: input, shape index: {}]
  %s5 = inlined_call_operand.vmem [shape: f32[2,1,128], index: 5, kind: input, shape index: {}]
  %s6 = inlined_call_operand.vmem [shape: f32[2,1,128], index: 6, kind: input, shape index: {}]
  %s7 = inlined_call_operand.vmem [shape: f32[2,1,128], index: 7, kind: input, shape index: {}]
  %s8 = inlined_call_operand.hbm [shape: f32[128,128], index: 8, kind: input, shape index: {}]
  %s9 = inlined_call_operand.vmem [shape: f32[1,128], index: 9, kind: input, shape index: {}]
  %s10 = inlined_call_operand.hbm [shape: f32[16,128], index: 10, kind: output, shape index: {0}]
  %s11 = inlined_call_operand.hbm [shape: f32[16,128], index: 11, kind: output, shape index: {1}]
  %12 = xla_tuple %s10, %s11
  %s13 = sld [smem:[#allocation0]]
  $region117: #{tpu_custom_call.1} parent=0
    _
  %s15 = ssub.s32 1, %s13
  %s16 = scalar_select 0, %s15, %s13
  $region1: #{tpu_custom_call.1} parent=0
    #allocation4 [shape = 'u8[16384]{0}', space=vmem, size = 0x4000, scoped, tag = 'input window, operand 0']
    #allocation5 [shape = 's32[2]{0}', space=sflag, size = 0x8, scoped, tag = 'scoped memory for tpu_custom_call.1']
    #allocation6 [shape = 's32[2]{0}', space=sflag, size = 0x8, scoped, tag = 'scoped memory for tpu_custom_call.1']
    #allocation7 [shape = 'u8[8192]{0}', space=vmem, size = 0x2000, scoped, tag = 'input window, operand 1, single buffered']
    #allocation8 [shape = 's32[1]{0}', space=sflag, size = 0x4, scoped, tag = 'scoped memory for tpu_custom_call.1']
    #allocation9 [shape = 'u8[65536]{0}', space=vmem, size = 0x10000, scoped, tag = 'input window, operand 2, single buffered']
    #allocation10 [shape = 'u8[262144]{0}', space=vmem, size = 0x40000, scoped, tag = 'input window, operand 4']
    #allocation11 [shape = 's32[2]{0}', space=sflag, size = 0x8, scoped, tag = 'scoped memory for tpu_custom_call.1']
    #allocation12 [shape = 'u8[65536]{0}', space=vmem, size = 0x10000, scoped, tag = 'input window, operand 8, single buffered']
    #allocation13 [shape = 'u8[16384]{0}', space=vmem, size = 0x4000, scoped, tag = 'output window, operand 0']
    #allocation14 [shape = 'u8[16384]{0}', space=vmem, size = 0x4000, scoped, tag = 'output window, operand 1']
    #allocation15 [shape = 's32[2]{0}', space=sflag, size = 0x8, scoped, tag = 'scoped memory for tpu_custom_call.1']
    %17 = vsyncpa [#allocation5], 0
    %s18 = scalar_lea.sflag [#allocation5], 1
    %19 = vsyncpa %s18, 0
    %20 = vsyncpa [#allocation8], 0
    %21 = vsyncpa [#allocation11], 0
    %s22 = scalar_lea.sflag [#allocation11], 1
    %23 = vsyncpa %s22, 0
    %24 = vsyncpa [#allocation6], 0
    %s25 = scalar_lea.sflag [#allocation6], 1
    %26 = vsyncpa %s25, 0
    %27 = vsyncpa [#allocation15], 0
    %s28 = scalar_lea.sflag [#allocation15], 1
    %29 = vsyncpa %s28, 0
    loop: start=0, step=1, limit=5
    $region2: #{tpu_custom_call.1} parent=1 // loop_pre_header
      _
    $region3: #{tpu_custom_call.1} parent=1 // loop_header
      %s31 = sphi 0, %s35
      %p32 = scmp.ge.s32.totalorder %s31, 5
      %s38 = sphi 0, %s50
      %s39 = sphi 0, %s46
      %s40 = sphi 0, %s38
      %s41 = sphi 0, %s39
      %s42 = sphi 0, %s40
      %s43 = sphi 0, %s41
      %s57 = sphi 0, %s59
      %s60 = sphi 0, %s57
      %s61 = sphi 0, %s60
      %s77 = sphi 0, %s61
      %s83 = sphi 0, %s85
      %s86 = sphi 0, %s83
      %s87 = sphi 0, %s86
      %s103 = sphi 0, %s87
      %s107 = sphi 0, %s107
      %s109 = sphi 0, %s107
      %s110 = sphi 0, %s109
      %s124 = sphi 0, %s110
      %s128 = sphi 0, %s128
      %s130 = sphi 0, %s128
      %s131 = sphi 0, %s130
      %s145 = sphi 0, %s131
      %s157 = sphi 0, %s159
      %s160 = sphi 0, %s157
      %s161 = sphi 0, %s160
      %s177 = sphi 0, %s161
      %s189 = sphi 0, %s191
      %s192 = sphi 0, %s189
      %s193 = sphi 0, %s192
      %s209 = sphi 0, %s193
      %s221 = sphi 0, %s223
      %s224 = sphi 0, %s221
      %s225 = sphi 0, %s224
      %s241 = sphi 0, %s225
      %s253 = sphi 0, %s255
      %s256 = sphi 0, %s253
      %s257 = sphi 0, %s256
      %s273 = sphi 0, %s257
      %s277 = sphi 0, %s277
      %s279 = sphi 0, %s277
      %s280 = sphi 0, %s279
      %s294 = sphi 0, %s280
      %s298 = sphi 0, %s298
      %s300 = sphi 0, %s298
      %s301 = sphi 0, %s300
      %s315 = sphi 0, %s301
      %s325 = sphi 0, %s327
      %s328 = sphi 0, %s325
      %s329 = sphi 0, %s328
      %s345 = sphi 0, %s329
      %s355 = sphi 0, %s357
      %s358 = sphi 0, %s355
      %s359 = sphi 0, %s358
      %s375 = sphi 0, %s359
    $region4: #{tpu_custom_call.1} parent=1 // loop_header_branch
      %34 = sbr.rel (%p32) target = $region8
    $region5: #{tpu_custom_call.1} parent=1 // loop_body
      %s36 = ssub.s32 %s31, 1
      %s37 = ssub.s32 %s31, 2
      %s44 = sadd.s32 1, %s39
      %p45 = scmp.ge.s32.totalorder %s44, 1
      %s46 = scalar_select %p45, 0, %s44
      %s47 = sadd.s32 1, %s38
      %s48 = scalar_select %p45, %s47, %s38
      %p49 = scmp.ge.s32.totalorder %s48, 3
      %s50 = scalar_select %p49, 0, %s48
      %p51 = scmp.eq.s32.totalorder %s38, 0
      %s52 = scalar_select %p51, %s39, 0
      %p53 = scmp.eq.s32.totalorder %s50, 0
      %s54 = scalar_select %p53, %s46, 0
      %s55 = ssub.s32 %s52, %s54
      %p56 = scmp.eq.s32.totalorder %s55, 0
      %s58 = sadd.s32 %s57, 1
      %s59 = scalar_select %p56, %s57, %s58
      %p62 = pneg %p56
      %p63 = scmp.eq.s32.totalorder %s31, 2
      %p64 = por %p62, %p63
      %p65 = scmp.ne.s32.totalorder %s57, %s60
      %p66 = scmp.eq.s32.totalorder %s31, 0
      %p67 = por %p65, %p66
      %p68 = scmp.ne.s32.totalorder %s57, %s60
      %p69 = scmp.eq.s32.totalorder %s36, 2
      %p70 = por %p68, %p69
      %p71 = scmp.ne.s32.totalorder %s60, %s61
      %p72 = scmp.eq.s32.totalorder %s36, 0
      %p73 = por %p71, %p72
      %p74 = scmp.ne.s32.totalorder %s60, %s61
      %p75 = scmp.eq.s32.totalorder %s37, 2
      %p76 = por %p74, %p75
      %p78 = scmp.ne.s32.totalorder %s61, %s77
      %p79 = scmp.eq.s32.totalorder %s37, 0
      %p80 = por %p78, %p79
      %s81 = ssub.s32 %s39, %s46
      %p82 = scmp.eq.s32.totalorder %s81, 0
      %s84 = sadd.s32 %s83, 1
      %s85 = scalar_select %p82, %s83, %s84
      %p88 = pneg %p82
      %p89 = scmp.eq.s32.totalorder %s31, 2
      %p90 = por %p88, %p89
      %p91 = scmp.ne.s32.totalorder %s83, %s86
      %p92 = scmp.eq.s32.totalorder %s31, 0
      %p93 = por %p91, %p92
      %p94 = scmp.ne.s32.totalorder %s83, %s86
      %p95 = scmp.eq.s32.totalorder %s36, 2
      %p96 = por %p94, %p95
      %p97 = scmp.ne.s32.totalorder %s86, %s87
      %p98 = scmp.eq.s32.totalorder %s36, 0
      %p99 = por %p97, %p98
      %p100 = scmp.ne.s32.totalorder %s86, %s87
      %p101 = scmp.eq.s32.totalorder %s37, 2
      %p102 = por %p100, %p101
      %p104 = scmp.ne.s32.totalorder %s87, %s103
      %p105 = scmp.eq.s32.totalorder %s37, 0
      %p106 = por %p104, %p105
      %s108 = sadd.s32 %s107, 1
      %p111 = scmp.eq.s32.totalorder %s31, 2
      %p112 = scmp.ne.s32.totalorder %s107, %s109
      %p113 = scmp.eq.s32.totalorder %s31, 0
      %p114 = por %p112, %p113
      %p115 = scmp.ne.s32.totalorder %s107, %s109
      %p116 = scmp.eq.s32.totalorder %s36, 2
      %p117 = por %p115, %p116
      %p118 = scmp.ne.s32.totalorder %s109, %s110
      %p119 = scmp.eq.s32.totalorder %s36, 0
      %p120 = por %p118, %p119
      %p121 = scmp.ne.s32.totalorder %s109, %s110
      %p122 = scmp.eq.s32.totalorder %s37, 2
      %p123 = por %p121, %p122
      %p125 = scmp.ne.s32.totalorder %s110, %s124
      %p126 = scmp.eq.s32.totalorder %s37, 0
      %p127 = por %p125, %p126
      %s129 = sadd.s32 %s128, 1
      %p132 = scmp.eq.s32.totalorder %s31, 2
      %p133 = scmp.ne.s32.totalorder %s128, %s130
      %p134 = scmp.eq.s32.totalorder %s31, 0
      %p135 = por %p133, %p134
      %p136 = scmp.ne.s32.totalorder %s128, %s130
      %p137 = scmp.eq.s32.totalorder %s36, 2
      %p138 = por %p136, %p137
      %p139 = scmp.ne.s32.totalorder %s130, %s131
      %p140 = scmp.eq.s32.totalorder %s36, 0
      %p141 = por %p139, %p140
      %p142 = scmp.ne.s32.totalorder %s130, %s131
      %p143 = scmp.eq.s32.totalorder %s37, 2
      %p144 = por %p142, %p143
      %p146 = scmp.ne.s32.totalorder %s131, %s145
      %p147 = scmp.eq.s32.totalorder %s37, 0
      %p148 = por %p146, %p147
      %s149 = ssub.s32 %s38, 1
      %p150 = scmp.gt.s32.totalorder %s149, 0
      %s151 = scalar_select %p150, %s149, 0
      %s152 = ssub.s32 %s50, 1
      %p153 = scmp.gt.s32.totalorder %s152, 0
      %s154 = scalar_select %p153, %s152, 0
      %s155 = ssub.s32 %s151, %s154
      %p156 = scmp.eq.s32.totalorder %s155, 0
      %s158 = sadd.s32 %s157, 1
      %s159 = scalar_select %p156, %s157, %s158
      %p162 = pneg %p156
      %p163 = scmp.eq.s32.totalorder %s31, 2
      %p164 = por %p162, %p163
      %p165 = scmp.ne.s32.totalorder %s157, %s160
      %p166 = scmp.eq.s32.totalorder %s31, 0
      %p167 = por %p165, %p166
      %p168 = scmp.ne.s32.totalorder %s157, %s160
      %p169 = scmp.eq.s32.totalorder %s36, 2
      %p170 = por %p168, %p169
      %p171 = scmp.ne.s32.totalorder %s160, %s161
      %p172 = scmp.eq.s32.totalorder %s36, 0
      %p173 = por %p171, %p172
      %p174 = scmp.ne.s32.totalorder %s160, %s161
      %p175 = scmp.eq.s32.totalorder %s37, 2
      %p176 = por %p174, %p175
      %p178 = scmp.ne.s32.totalorder %s161, %s177
      %p179 = scmp.eq.s32.totalorder %s37, 0
      %p180 = por %p178, %p179
      %s181 = ssub.s32 %s38, 1
      %p182 = scmp.gt.s32.totalorder %s181, 0
      %s183 = scalar_select %p182, %s181, 0
      %s184 = ssub.s32 %s50, 1
      %p185 = scmp.gt.s32.totalorder %s184, 0
      %s186 = scalar_select %p185, %s184, 0
      %s187 = ssub.s32 %s183, %s186
      %p188 = scmp.eq.s32.totalorder %s187, 0
      %s190 = sadd.s32 %s189, 1
      %s191 = scalar_select %p188, %s189, %s190
      %p194 = pneg %p188
      %p195 = scmp.eq.s32.totalorder %s31, 2
      %p196 = por %p194, %p195
      %p197 = scmp.ne.s32.totalorder %s189, %s192
      %p198 = scmp.eq.s32.totalorder %s31, 0
      %p199 = por %p197, %p198
      %p200 = scmp.ne.s32.totalorder %s189, %s192
      %p201 = scmp.eq.s32.totalorder %s36, 2
      %p202 = por %p200, %p201
      %p203 = scmp.ne.s32.totalorder %s192, %s193
      %p204 = scmp.eq.s32.totalorder %s36, 0
      %p205 = por %p203, %p204
      %p206 = scmp.ne.s32.totalorder %s192, %s193
      %p207 = scmp.eq.s32.totalorder %s37, 2
      %p208 = por %p206, %p207
      %p210 = scmp.ne.s32.totalorder %s193, %s209
      %p211 = scmp.eq.s32.totalorder %s37, 0
      %p212 = por %p210, %p211
      %s213 = ssub.s32 %s38, 1
      %p214 = scmp.gt.s32.totalorder %s213, 0
      %s215 = scalar_select %p214, %s213, 0
      %s216 = ssub.s32 %s50, 1
      %p217 = scmp.gt.s32.totalorder %s216, 0
      %s218 = scalar_select %p217, %s216, 0
      %s219 = ssub.s32 %s215, %s218
      %p220 = scmp.eq.s32.totalorder %s219, 0
      %s222 = sadd.s32 %s221, 1
      %s223 = scalar_select %p220, %s221, %s222
      %p226 = pneg %p220
      %p227 = scmp.eq.s32.totalorder %s31, 2
      %p228 = por %p226, %p227
      %p229 = scmp.ne.s32.totalorder %s221, %s224
      %p230 = scmp.eq.s32.totalorder %s31, 0
      %p231 = por %p229, %p230
      %p232 = scmp.ne.s32.totalorder %s221, %s224
      %p233 = scmp.eq.s32.totalorder %s36, 2
      %p234 = por %p232, %p233
      %p235 = scmp.ne.s32.totalorder %s224, %s225
      %p236 = scmp.eq.s32.totalorder %s36, 0
      %p237 = por %p235, %p236
      %p238 = scmp.ne.s32.totalorder %s224, %s225
      %p239 = scmp.eq.s32.totalorder %s37, 2
      %p240 = por %p238, %p239
      %p242 = scmp.ne.s32.totalorder %s225, %s241
      %p243 = scmp.eq.s32.totalorder %s37, 0
      %p244 = por %p242, %p243
      %s245 = ssub.s32 %s38, 1
      %p246 = scmp.gt.s32.totalorder %s245, 0
      %s247 = scalar_select %p246, %s245, 0
      %s248 = ssub.s32 %s50, 1
      %p249 = scmp.gt.s32.totalorder %s248, 0
      %s250 = scalar_select %p249, %s248, 0
      %s251 = ssub.s32 %s247, %s250
      %p252 = scmp.eq.s32.totalorder %s251, 0
      %s254 = sadd.s32 %s253, 1
      %s255 = scalar_select %p252, %s253, %s254
      %p258 = pneg %p252
      %p259 = scmp.eq.s32.totalorder %s31, 2
      %p260 = por %p258, %p259
      %p261 = scmp.ne.s32.totalorder %s253, %s256
      %p262 = scmp.eq.s32.totalorder %s31, 0
      %p263 = por %p261, %p262
      %p264 = scmp.ne.s32.totalorder %s253, %s256
      %p265 = scmp.eq.s32.totalorder %s36, 2
      %p266 = por %p264, %p265
      %p267 = scmp.ne.s32.totalorder %s256, %s257
      %p268 = scmp.eq.s32.totalorder %s36, 0
      %p269 = por %p267, %p268
      %p270 = scmp.ne.s32.totalorder %s256, %s257
      %p271 = scmp.eq.s32.totalorder %s37, 2
      %p272 = por %p270, %p271
      %p274 = scmp.ne.s32.totalorder %s257, %s273
      %p275 = scmp.eq.s32.totalorder %s37, 0
      %p276 = por %p274, %p275
      %s278 = sadd.s32 %s277, 1
      %p281 = scmp.eq.s32.totalorder %s31, 2
      %p282 = scmp.ne.s32.totalorder %s277, %s279
      %p283 = scmp.eq.s32.totalorder %s31, 0
      %p284 = por %p282, %p283
      %p285 = scmp.ne.s32.totalorder %s277, %s279
      %p286 = scmp.eq.s32.totalorder %s36, 2
      %p287 = por %p285, %p286
      %p288 = scmp.ne.s32.totalorder %s279, %s280
      %p289 = scmp.eq.s32.totalorder %s36, 0
      %p290 = por %p288, %p289
      %p291 = scmp.ne.s32.totalorder %s279, %s280
      %p292 = scmp.eq.s32.totalorder %s37, 2
      %p293 = por %p291, %p292
      %p295 = scmp.ne.s32.totalorder %s280, %s294
      %p296 = scmp.eq.s32.totalorder %s37, 0
      %p297 = por %p295, %p296
      %s299 = sadd.s32 %s298, 1
      %p302 = scmp.eq.s32.totalorder %s31, 2
      %p303 = scmp.ne.s32.totalorder %s298, %s300
      %p304 = scmp.eq.s32.totalorder %s31, 0
      %p305 = por %p303, %p304
      %p306 = scmp.ne.s32.totalorder %s298, %s300
      %p307 = scmp.eq.s32.totalorder %s36, 2
      %p308 = por %p306, %p307
      %p309 = scmp.ne.s32.totalorder %s300, %s301
      %p310 = scmp.eq.s32.totalorder %s36, 0
      %p311 = por %p309, %p310
      %p312 = scmp.ne.s32.totalorder %s300, %s301
      %p313 = scmp.eq.s32.totalorder %s37, 2
      %p314 = por %p312, %p313
      %p316 = scmp.ne.s32.totalorder %s301, %s315
      %p317 = scmp.eq.s32.totalorder %s37, 0
      %p318 = por %p316, %p317
      %p319 = scmp.eq.s32.totalorder %s38, 2
      %s320 = scalar_select %p319, %s39, 0
      %p321 = scmp.eq.s32.totalorder %s50, 2
      %s322 = scalar_select %p321, %s46, 0
      %s323 = ssub.s32 %s320, %s322
      %p324 = scmp.eq.s32.totalorder %s323, 0
      %s326 = sadd.s32 %s325, 1
      %s327 = scalar_select %p324, %s325, %s326
      %p330 = pneg %p324
      %p331 = scmp.eq.s32.totalorder %s31, 2
      %p332 = por %p330, %p331
      %p333 = scmp.ne.s32.totalorder %s325, %s328
      %p334 = scmp.eq.s32.totalorder %s31, 0
      %p335 = por %p333, %p334
      %p336 = scmp.ne.s32.totalorder %s325, %s328
      %p337 = scmp.eq.s32.totalorder %s36, 2
      %p338 = por %p336, %p337
      %p339 = scmp.ne.s32.totalorder %s328, %s329
      %p340 = scmp.eq.s32.totalorder %s36, 0
      %p341 = por %p339, %p340
      %p342 = scmp.ne.s32.totalorder %s328, %s329
      %p343 = scmp.eq.s32.totalorder %s37, 2
      %p344 = por %p342, %p343
      %p346 = scmp.ne.s32.totalorder %s329, %s345
      %p347 = scmp.eq.s32.totalorder %s37, 0
      %p348 = por %p346, %p347
      %p349 = scmp.eq.s32.totalorder %s38, 2
      %s350 = scalar_select %p349, %s39, 0
      %p351 = scmp.eq.s32.totalorder %s50, 2
      %s352 = scalar_select %p351, %s46, 0
      %s353 = ssub.s32 %s350, %s352
      %p354 = scmp.eq.s32.totalorder %s353, 0
      %s356 = sadd.s32 %s355, 1
      %s357 = scalar_select %p354, %s355, %s356
      %p360 = pneg %p354
      %p361 = scmp.eq.s32.totalorder %s31, 2
      %p362 = por %p360, %p361
      %p363 = scmp.ne.s32.totalorder %s355, %s358
      %p364 = scmp.eq.s32.totalorder %s31, 0
      %p365 = por %p363, %p364
      %p366 = scmp.ne.s32.totalorder %s355, %s358
      %p367 = scmp.eq.s32.totalorder %s36, 2
      %p368 = por %p366, %p367
      %p369 = scmp.ne.s32.totalorder %s358, %s359
      %p370 = scmp.eq.s32.totalorder %s36, 0
      %p371 = por %p369, %p370
      %p372 = scmp.ne.s32.totalorder %s358, %s359
      %p373 = scmp.eq.s32.totalorder %s37, 2
      %p374 = por %p372, %p373
      %p376 = scmp.ne.s32.totalorder %s359, %s375
      %p377 = scmp.eq.s32.totalorder %s37, 0
      %p378 = por %p376, %p377
      %p379 = scmp.le.s32.totalorder 1, %s31
      %p380 = scmp.lt.s32.totalorder %s31, 4
      %p381 = pnand %p379, %p380
      %p382 = pneg %p381
      // Predicated region
      $region9: #{tpu_custom_call.1} parent=5 // pred_check
        _
      $region10: #{tpu_custom_call.1} parent=5 // pred_check_branch
        %384 = sbr.rel (%p381) target = $region12
      $region11: #{tpu_custom_call.1} parent=5 // pred_region
        %s385 = ssub.s32 %s31, 1
        // Predicated region
        $region13: #{tpu_custom_call.1} parent=11 // pred_check
          %p386 = pneg %p99
        $region14: #{tpu_custom_call.1} parent=11 // pred_check_branch
          %388 = sbr.rel (%p386) target = $region16
        $region15: #{tpu_custom_call.1} parent=11 // pred_region
          %s389 = smul.u32 2, %s41
          %s391 = ssub.s32 256, 256
          %392 = vsyncadd [#allocation8], %s391
          %s393 = smul.addr %s389, 128
          %s394 = scalar_lea.hbm %s1, %s393
          %s395 = sshll.u32 [#allocation7], 4
          %s396 = int_to_ptr.vmem [resolvable:$true] %s395
          %401 = dma.hbm_to_vmem [thread:$0]  %s394, 256, %s396, [#allocation8], 128, 128, 8
        $region16: #{tpu_custom_call.1} parent=11 // pred_fallthru
          _
        // Predicated region
        $region17: #{tpu_custom_call.1} parent=11 // pred_check
          %p402 = pneg %p120
        $region18: #{tpu_custom_call.1} parent=11 // pred_check_branch
          %404 = sbr.rel (%p402) target = $region20
        $region19: #{tpu_custom_call.1} parent=11 // pred_region
          %s406 = ssub.s32 2048, 2048
          %407 = vsyncadd [#allocation8], %s406
          %s408 = sshll.u32 [#allocation9], 4
          %s409 = int_to_ptr.vmem [resolvable:$true] %s408
          %414 = dma.hbm_to_vmem [thread:$0]  %s2, 2048, %s409, [#allocation8], 128, 128, 8
        $region20: #{tpu_custom_call.1} parent=11 // pred_fallthru
          _
        // Predicated region
        $region21: #{tpu_custom_call.1} parent=11 // pred_check
          %p415 = pneg %p141
        $region22: #{tpu_custom_call.1} parent=11 // pred_check_branch
          %417 = sbr.rel (%p415) target = $region24
        $region23: #{tpu_custom_call.1} parent=11 // pred_region
          _
        $region24: #{tpu_custom_call.1} parent=11 // pred_fallthru
          _
        // Predicated region
        $region25: #{tpu_custom_call.1} parent=11 // pred_check
          %p418 = pneg %p290
        $region26: #{tpu_custom_call.1} parent=11 // pred_check_branch
          %420 = sbr.rel (%p418) target = $region28
        $region27: #{tpu_custom_call.1} parent=11 // pred_region
          %s422 = ssub.s32 2048, 2048
          %423 = vsyncadd [#allocation11], %s422
          %s424 = sshll.u32 [#allocation12], 4
          %s425 = int_to_ptr.vmem [resolvable:$true] %s424
          %430 = dma.hbm_to_vmem [thread:$0]  %s8, 2048, %s425, [#allocation11], 128, 128, 8
        $region28: #{tpu_custom_call.1} parent=11 // pred_fallthru
          _
        // Predicated region
        $region29: #{tpu_custom_call.1} parent=11 // pred_check
          %p431 = pneg %p311
        $region30: #{tpu_custom_call.1} parent=11 // pred_check_branch
          %433 = sbr.rel (%p431) target = $region32
        $region31: #{tpu_custom_call.1} parent=11 // pred_region
          _
        $region32: #{tpu_custom_call.1} parent=11 // pred_fallthru
          _
      $region12: #{tpu_custom_call.1} parent=5 // pred_fallthru
        _
      %p434 = scmp.lt.s32.totalorder %s31, 3
      // Predicated region
      $region33: #{tpu_custom_call.1} parent=5 // pred_check
        %p435 = pneg %p434
      $region34: #{tpu_custom_call.1} parent=5 // pred_check_branch
        %437 = sbr.rel (%p435) target = $region36
      $region35: #{tpu_custom_call.1} parent=5 // pred_region
        // Predicated region
        $region37: #{tpu_custom_call.1} parent=35 // pred_check
          %p438 = pneg %p67
        $region38: #{tpu_custom_call.1} parent=35 // pred_check_branch
          %440 = sbr.rel (%p438) target = $region40
        $region39: #{tpu_custom_call.1} parent=35 // pred_region
          %s441 = sand.u32 %s57, 1
          %s442 = scalar_lea.sflag [#allocation5], %s441
          %s443 = sand.u32 %s57, 1
          %s444 = smul.addr %s443, 16
          %s445 = scalar_lea.vmem [#allocation4], %s444
          %p446 = scmp.eq.s32.totalorder %s38, 0
          %s447 = scalar_select %p446, %s39, 0
          %s448 = smul.u32 2, %s447
          %s450 = ssub.s32 256, 256
          %451 = vsyncadd %s442, %s450
          %s452 = smul.addr %s448, 128
          %s453 = scalar_lea.hbm %s0, %s452
          %s454 = sshll.u32 %s445, 4
          %s455 = int_to_ptr.vmem [resolvable:$true] %s454
          %460 = dma.hbm_to_vmem [thread:$0]  %s453, 256, %s455, %s442, 128, 128, 8
        $region40: #{tpu_custom_call.1} parent=35 // pred_fallthru
          _
        // Predicated region
        $region41: #{tpu_custom_call.1} parent=35 // pred_check
          %p461 = pneg %p167
        $region42: #{tpu_custom_call.1} parent=35 // pred_check_branch
          %463 = sbr.rel (%p461) target = $region44
        $region43: #{tpu_custom_call.1} parent=35 // pred_region
          %s464 = sand.u32 %s31, 1
          %s465 = scalar_lea.sflag [#allocation11], %s464
          %s466 = sand.u32 %s157, 1
          %s467 = smul.addr %s466, 256
          %s468 = scalar_lea.vmem [#allocation10], %s467
          %s469 = ssub.s32 %s38, 1
          %p470 = scmp.gt.s32.totalorder %s469, 0
          %s471 = scalar_select %p470, %s469, 0
          %s473 = ssub.s32 4096, 4096
          %474 = vsyncadd %s465, %s473
          %s475 = smul.addr %s471, 32
          %s476 = smul.addr %s475, 128
          %s477 = scalar_lea.hbm %s4, %s476
          %s478 = sshll.u32 %s468, 4
          %s479 = int_to_ptr.vmem [resolvable:$true] %s478
          %484 = dma.hbm_to_vmem [thread:$0]  %s477, 4096, %s479, %s465, 128, 128, 8
        $region44: #{tpu_custom_call.1} parent=35 // pred_fallthru
          _
        // Predicated region
        $region45: #{tpu_custom_call.1} parent=35 // pred_check
          %p485 = pneg %p199
        $region46: #{tpu_custom_call.1} parent=35 // pred_check_branch
          %487 = sbr.rel (%p485) target = $region48
        $region47: #{tpu_custom_call.1} parent=35 // pred_region
          %s488 = ssub.s32 %s38, 1
          %p489 = scmp.gt.s32.totalorder %s488, 0
          %s490 = scalar_select %p489, %s488, 0
          %p491 = scmp.lt.s32.totalorder %s490, 1
          %s492 = scalar_select %p491, %s490, 1
          %s493 = scalar_lea.vmem %s5, %s492
          %s494 = ssub.s32 %s38, 1
          %p495 = scmp.gt.s32.totalorder %s494, 0
          %s496 = scalar_select %p495, %s494, 0
        $region48: #{tpu_custom_call.1} parent=35 // pred_fallthru
          _
        // Predicated region
        $region49: #{tpu_custom_call.1} parent=35 // pred_check
          %p497 = pneg %p231
        $region50: #{tpu_custom_call.1} parent=35 // pred_check_branch
          %499 = sbr.rel (%p497) target = $region52
        $region51: #{tpu_custom_call.1} parent=35 // pred_region
          %s500 = ssub.s32 %s38, 1
          %p501 = scmp.gt.s32.totalorder %s500, 0
          %s502 = scalar_select %p501, %s500, 0
          %p503 = scmp.lt.s32.totalorder %s502, 1
          %s504 = scalar_select %p503, %s502, 1
          %s505 = scalar_lea.vmem %s6, %s504
          %s506 = ssub.s32 %s38, 1
          %p507 = scmp.gt.s32.totalorder %s506, 0
          %s508 = scalar_select %p507, %s506, 0
        $region52: #{tpu_custom_call.1} parent=35 // pred_fallthru
          _
        // Predicated region
        $region53: #{tpu_custom_call.1} parent=35 // pred_check
          %p509 = pneg %p263
        $region54: #{tpu_custom_call.1} parent=35 // pred_check_branch
          %511 = sbr.rel (%p509) target = $region56
        $region55: #{tpu_custom_call.1} parent=35 // pred_region
          %s512 = ssub.s32 %s38, 1
          %p513 = scmp.gt.s32.totalorder %s512, 0
          %s514 = scalar_select %p513, %s512, 0
          %p515 = scmp.lt.s32.totalorder %s514, 1
          %s516 = scalar_select %p515, %s514, 1
          %s517 = scalar_lea.vmem %s7, %s516
          %s518 = ssub.s32 %s38, 1
          %p519 = scmp.gt.s32.totalorder %s518, 0
          %s520 = scalar_select %p519, %s518, 0
        $region56: #{tpu_custom_call.1} parent=35 // pred_fallthru
          _
      $region36: #{tpu_custom_call.1} parent=5 // pred_fallthru
        _
      %p521 = scmp.le.s32.totalorder 1, %s31
      %p522 = scmp.lt.s32.totalorder %s31, 4
      %p523 = pnand %p521, %p522
      %p524 = pneg %p523
      // Predicated region
      $region57: #{tpu_custom_call.1} parent=5 // pred_check
        _
      $region58: #{tpu_custom_call.1} parent=5 // pred_check_branch
        %526 = sbr.rel (%p523) target = $region60
      $region59: #{tpu_custom_call.1} parent=5 // pred_region
        %s527 = ssub.s32 %s31, 1
        %s528 = sand.u32 %s60, 1
        %s529 = scalar_lea.sflag [#allocation5], %s528
        %s530 = sand.u32 %s60, 1
        %s531 = smul.addr %s530, 16
        %s532 = scalar_lea.vmem [#allocation4], %s531
        // Predicated region
        $region61: #{tpu_custom_call.1} parent=59 // pred_check
          %p533 = pneg %p73
        $region62: #{tpu_custom_call.1} parent=59 // pred_check_branch
          %535 = sbr.rel (%p533) target = $region64
        $region63: #{tpu_custom_call.1} parent=59 // pred_region
          %536 = dma.done %s529, 256
        $region64: #{tpu_custom_call.1} parent=59 // pred_fallthru
          _
        // Predicated region
        $region65: #{tpu_custom_call.1} parent=59 // pred_check
          %p537 = pneg %p99
        $region66: #{tpu_custom_call.1} parent=59 // pred_check_branch
          %539 = sbr.rel (%p537) target = $region68
        $region67: #{tpu_custom_call.1} parent=59 // pred_region
          %540 = dma.done [#allocation8], 256
        $region68: #{tpu_custom_call.1} parent=59 // pred_fallthru
          _
        // Predicated region
        $region69: #{tpu_custom_call.1} parent=59 // pred_check
          %p541 = pneg %p120
        $region70: #{tpu_custom_call.1} parent=59 // pred_check_branch
          %543 = sbr.rel (%p541) target = $region72
        $region71: #{tpu_custom_call.1} parent=59 // pred_region
          %544 = dma.done [#allocation8], 2048
        $region72: #{tpu_custom_call.1} parent=59 // pred_fallthru
          _
        %s545 = sand.u32 %s36, 1
        %s546 = scalar_lea.sflag [#allocation11], %s545
        %s547 = sand.u32 %s160, 1
        %s548 = smul.addr %s547, 256
        %s549 = scalar_lea.vmem [#allocation10], %s548
        // Predicated region
        $region73: #{tpu_custom_call.1} parent=59 // pred_check
          %p550 = pneg %p173
        $region74: #{tpu_custom_call.1} parent=59 // pred_check_branch
          %552 = sbr.rel (%p550) target = $region76
        $region75: #{tpu_custom_call.1} parent=59 // pred_region
          %553 = dma.done %s546, 4096
        $region76: #{tpu_custom_call.1} parent=59 // pred_fallthru
          _
        // Predicated region
        $region77: #{tpu_custom_call.1} parent=59 // pred_check
          %p554 = pneg %p290
        $region78: #{tpu_custom_call.1} parent=59 // pred_check_branch
          %556 = sbr.rel (%p554) target = $region80
        $region79: #{tpu_custom_call.1} parent=59 // pred_region
          %557 = dma.done [#allocation11], 2048
        $region80: #{tpu_custom_call.1} parent=59 // pred_fallthru
          _
        %s558 = sand.u32 %s60, 1
        %s559 = scalar_lea.sflag [#allocation5], %s558
        %s560 = sand.u32 %s60, 1
        %s561 = smul.addr %s560, 16
        %s562 = scalar_lea.vmem [#allocation4], %s561
        %p563 = pneg %p73
        %p564 = pneg %p70
        %p565 = pneg %p99
        %p566 = pneg %p96
        %p567 = pneg %p120
        %p568 = pneg %p117
        %p569 = pneg %p141
        %p570 = pneg %p138
        %s571 = sand.u32 %s36, 1
        %s572 = scalar_lea.sflag [#allocation11], %s571
        %s573 = sand.u32 %s160, 1
        %s574 = smul.addr %s573, 256
        %s575 = scalar_lea.vmem [#allocation10], %s574
        %p576 = pneg %p173
        %p577 = pneg %p170
        %s578 = ssub.s32 %s40, 1
        %p579 = scmp.gt.s32.totalorder %s578, 0
        %s580 = scalar_select %p579, %s578, 0
        %p581 = scmp.lt.s32.totalorder %s580, 1
        %s582 = scalar_select %p581, %s580, 1
        %s583 = scalar_lea.vmem %s5, %s582
        %p584 = pneg %p205
        %p585 = pneg %p202
        %s586 = ssub.s32 %s40, 1
        %p587 = scmp.gt.s32.totalorder %s586, 0
        %s588 = scalar_select %p587, %s586, 0
        %p589 = scmp.lt.s32.totalorder %s588, 1
        %s590 = scalar_select %p589, %s588, 1
        %s591 = scalar_lea.vmem %s6, %s590
        %p592 = pneg %p237
        %p593 = pneg %p234
        %s594 = ssub.s32 %s40, 1
        %p595 = scmp.gt.s32.totalorder %s594, 0
        %s596 = scalar_select %p595, %s594, 0
        %p597 = scmp.lt.s32.totalorder %s596, 1
        %s598 = scalar_select %p597, %s596, 1
        %s599 = scalar_lea.vmem %s7, %s598
        %p600 = pneg %p269
        %p601 = pneg %p266
        %p602 = pneg %p290
        %p603 = pneg %p287
        %p604 = pneg %p311
        %p605 = pneg %p308
        %p606 = pneg %p341
        %p607 = pneg %p338
        %s608 = sand.u32 %s328, 1
        %s609 = scalar_lea.sflag [#allocation6], %s608
        %s610 = sand.u32 %s328, 1
        %s611 = smul.addr %s610, 16
        %s612 = scalar_lea.vmem [#allocation13], %s611
        %p613 = pneg %p371
        %p614 = pneg %p368
        %s615 = sand.u32 %s358, 1
        %s616 = scalar_lea.sflag [#allocation15], %s615
        %s617 = sand.u32 %s358, 1
        %s618 = smul.addr %s617, 16
        %s619 = scalar_lea.vmem [#allocation14], %s618
        %p620 = scmp.eq.s32.totalorder %s40, 0
        %s621 = scalar_select %p620, %s41, 0
        %s622 = smul.u32 2, %s621
        %s623 = smul.u32 2, %s41
        %s624 = ssub.s32 %s40, 1
        %p625 = scmp.gt.s32.totalorder %s624, 0
        %s626 = scalar_select %p625, %s624, 0
        %s627 = ssub.s32 %s40, 1
        %p628 = scmp.gt.s32.totalorder %s627, 0
        %s629 = scalar_select %p628, %s627, 0
        %p630 = scmp.lt.s32.totalorder %s629, 1
        %s631 = scalar_select %p630, %s629, 1
        %s632 = scalar_lea.vmem %s5, %s631
        %s633 = ssub.s32 %s40, 1
        %p634 = scmp.gt.s32.totalorder %s633, 0
        %s635 = scalar_select %p634, %s633, 0
        %s636 = ssub.s32 %s40, 1
        %p637 = scmp.gt.s32.totalorder %s636, 0
        %s638 = scalar_select %p637, %s636, 0
        %p639 = scmp.lt.s32.totalorder %s638, 1
        %s640 = scalar_select %p639, %s638, 1
        %s641 = scalar_lea.vmem %s6, %s640
        %s642 = ssub.s32 %s40, 1
        %p643 = scmp.gt.s32.totalorder %s642, 0
        %s644 = scalar_select %p643, %s642, 0
        %s645 = ssub.s32 %s40, 1
        %p646 = scmp.gt.s32.totalorder %s645, 0
        %s647 = scalar_select %p646, %s645, 0
        %p648 = scmp.lt.s32.totalorder %s647, 1
        %s649 = scalar_select %p648, %s647, 1
        %s650 = scalar_lea.vmem %s7, %s649
        %s651 = ssub.s32 %s40, 1
        %p652 = scmp.gt.s32.totalorder %s651, 0
        %s653 = scalar_select %p652, %s651, 0
        %p654 = scmp.eq.s32.totalorder %s40, 2
        %s655 = scalar_select %p654, %s41, 0
        %s656 = smul.u32 2, %s655
        %p657 = scmp.eq.s32.totalorder %s40, 2
        %s658 = scalar_select %p657, %s41, 0
        %s659 = smul.u32 2, %s658
        %s660 = smul.u32 %s41, 16
        %p661 = scmp.eq.s32.totalorder %s40, 0
        // Predicated region
        $region81: #{tpu_custom_call.1} parent=59 // pred_check
          %p662 = pneg %p661
        $region82: #{tpu_custom_call.1} parent=59 // pred_check_branch
          %664 = sbr.rel (%p662) target = $region84
        $region83: #{tpu_custom_call.1} parent=59 // pred_region
          %v665 = vld [vmem:[%s532] sm:$0xff]
          %v666 = vld [vmem:[%s532 + $0x8] sm:$0xff]
          %v667 = vld [vmem:[#allocation9] sm:$0xff]
          %v668 = vld [vmem:[#allocation9 + $0x8] sm:$0xff]
          %v669 = vld [vmem:[#allocation9 + $0x10] sm:$0xff]
          %v670 = vld [vmem:[#allocation9 + $0x18] sm:$0xff]
          %v671 = vld [vmem:[#allocation9 + $0x20] sm:$0xff]
          %v672 = vld [vmem:[#allocation9 + $0x28] sm:$0xff]
          %v673 = vld [vmem:[#allocation9 + $0x30] sm:$0xff]
          %v674 = vld [vmem:[#allocation9 + $0x38] sm:$0xff]
          %v675 = vld [vmem:[#allocation9 + $0x40] sm:$0xff]
          %v676 = vld [vmem:[#allocation9 + $0x48] sm:$0xff]
          %v677 = vld [vmem:[#allocation9 + $0x50] sm:$0xff]
          %v678 = vld [vmem:[#allocation9 + $0x58] sm:$0xff]
          %v679 = vld [vmem:[#allocation9 + $0x60] sm:$0xff]
          %v680 = vld [vmem:[#allocation9 + $0x68] sm:$0xff]
          %v681 = vld [vmem:[#allocation9 + $0x70] sm:$0xff]
          %v682 = vld [vmem:[#allocation9 + $0x78] sm:$0xff]
          %v683 = vld [vmem:[%s3] sm:$0x1]
          %v685 = vlaneseq
          %v686 = vshrl.u32 %v685, 7
          %v687 = vsub.s32 0, %v686
          %v688 = vrot.slane %v683, %v687
          %690 = vmatprep.subr.mxu0 0.0
          %691 = vmatpush1.msra.mxu0 %v682
          %692 = vmatprep.subr.mxu0 0.0
          %693 = vmatpush1.msra.mxu0 %v681
          %694 = vmatprep.subr.mxu0 0.0
          %695 = vmatpush1.msra.mxu0 %v680
          %696 = vmatprep.subr.mxu0 0.0
          %697 = vmatpush1.msra.mxu0 %v679
          %698 = vmatprep.subr.mxu0 0.0
          %699 = vmatpush1.msra.mxu0 %v678
          %700 = vmatprep.subr.mxu0 0.0
          %701 = vmatpush1.msra.mxu0 %v677
          %702 = vmatprep.subr.mxu0 0.0
          %703 = vmatpush1.msra.mxu0 %v676
          %704 = vmatprep.subr.mxu0 0.0
          %705 = vmatpush1.msra.mxu0 %v675
          %706 = vmatprep.subr.mxu0 0.0
          %707 = vmatpush1.msra.mxu0 %v674
          %708 = vmatprep.subr.mxu0 0.0
          %709 = vmatpush1.msra.mxu0 %v673
          %710 = vmatprep.subr.mxu0 0.0
          %711 = vmatpush1.msra.mxu0 %v672
          %712 = vmatprep.subr.mxu0 0.0
          %713 = vmatpush1.msra.mxu0 %v671
          %714 = vmatprep.subr.mxu0 0.0
          %715 = vmatpush1.msra.mxu0 %v670
          %716 = vmatprep.subr.mxu0 0.0
          %717 = vmatpush1.msra.mxu0 %v669
          %718 = vmatprep.subr.mxu0 0.0
          %719 = vmatpush1.msra.mxu0 %v668
          %720 = vmatprep.subr.mxu0 0.0
          %721 = vmatpush1.msra.mxu0 %v667
          %722 = vmatprep.subr.mxu0 0.0
          %723 = vmatpush2.msra.mxu0 0.0
          %724 = vmatprep.subr.mxu0 0.0
          %725 = vmatpush2.msra.mxu0 0.0
          %726 = vmatprep.subr.mxu0 0.0
          %727 = vmatpush2.msra.mxu0 0.0
          %728 = vmatprep.subr.mxu0 0.0
          %729 = vmatpush2.msra.mxu0 0.0
          %730 = vmatprep.subr.mxu0 0.0
          %731 = vmatpush2.msra.mxu0 0.0
          %732 = vmatprep.subr.mxu0 0.0
          %733 = vmatpush2.msra.mxu0 0.0
          %734 = vmatprep.subr.mxu0 0.0
          %735 = vmatpush2.msra.mxu0 0.0
          %736 = vmatprep.subr.mxu0 0.0
          %737 = vmatpush2.msra.mxu0 0.0
          %738 = vmatprep.subr.mxu0 0.0
          %739 = vmatpush2.msra.mxu0 0.0
          %740 = vmatprep.subr.mxu0 0.0
          %741 = vmatpush2.msra.mxu0 0.0
          %742 = vmatprep.subr.mxu0 0.0
          %743 = vmatpush2.msra.mxu0 0.0
          %744 = vmatprep.subr.mxu0 0.0
          %745 = vmatpush2.msra.mxu0 0.0
          %746 = vmatprep.subr.mxu0 0.0
          %747 = vmatpush2.msra.mxu0 0.0
          %748 = vmatprep.subr.mxu0 0.0
          %749 = vmatpush2.msra.mxu0 0.0
          %750 = vmatprep.subr.mxu0 0.0
          %751 = vmatpush2.msra.mxu0 0.0
          %752 = vmatprep.subr.mxu0 0.0
          %753 = vmatpush2.msra.mxu0 0.0
          %754 = vmatprep.mubr.f32.mxu0 0.0
          %755 = vmatmul.mubr.f32.gmra.mxu0 %v665
          %v756 = vpop.f32.mrf.mxu0
          %v757 = vadd.f32 %v688, %v756
          %v758 = vpop.f32.mrf.mxu0
          %759 = vmatprep.mubr.f32.mxu0 0.0
          %760 = vmatmul.mubr.f32.gmra.mxu0 %v666
          %v761 = vpop.f32.mrf.mxu0
          %v762 = vadd.f32 %v688, %v761
          %v763 = vpop.f32.mrf.mxu0
          %764 = vdwg.mxu0
          %v765 = vmax.f32 %v757, 0.0
          %v766 = vmax.f32 %v762, 0.0
          %s767 = scalar_lea.vmem [#allocation2], %s660
          %768 = vst [vmem:[%s767] sm:$0xff] %v765
          %769 = vst [vmem:[%s767 + $0x8] sm:$0xff] %v766
          %s770 = scalar_lea.vmem [#allocation3], %s660
          %771 = vst [vmem:[%s770] sm:$0xff] %v765
          %772 = vst [vmem:[%s770 + $0x8] sm:$0xff] %v766
        $region84: #{tpu_custom_call.1} parent=59 // pred_fallthru
          _
        %p773 = scmp.gt.s32.totalorder %s40, 0
        // Predicated region
        $region85: #{tpu_custom_call.1} parent=59 // pred_check
          %p774 = pneg %p773
        $region86: #{tpu_custom_call.1} parent=59 // pred_check_branch
          %776 = sbr.rel (%p774) target = $region88
        $region87: #{tpu_custom_call.1} parent=59 // pred_region
          %s777 = ssub.s32 %s40, 1
          %p778 = scmp.lt.s32.totalorder %s777, 0
          %s779 = ssub.s32 0, %s777
          %s780 = scalar_select %p778, %s779, %s777
          %s781 = sand.u32 %s780, 1
          %s782 = ssub.s32 0, %s781
          %s783 = scalar_select %p778, %s782, %s781
          %p784 = scmp.lt.s32.totalorder %s40, 0
          %s785 = ssub.s32 0, %s40
          %s786 = scalar_select %p784, %s785, %s40
          %s787 = sand.u32 %s786, 1
          %s788 = ssub.s32 0, %s787
          %s789 = scalar_select %p784, %s788, %s787
          %s790 = smul.u32 %s783, 16
          %s791 = sadd.s32 %s790, %s660
          %s792 = smul.u32 %s789, 16
          %s793 = sadd.s32 %s792, %s660
          %s794 = scalar_lea.vmem [#allocation2], %s790
          %v795 = vld [vmem:[%s794] sm:$0xff]
          %v796 = vld [vmem:[%s794 + $0x8] sm:$0xff]
          %s797 = scalar_lea.vmem [#allocation2], %s791
          %v798 = vld [vmem:[%s797] sm:$0xff]
          %v799 = vld [vmem:[%s797 + $0x8] sm:$0xff]
          %v800 = vld [vmem:[#allocation7] sm:$0xff]
          %v801 = vld [vmem:[#allocation7 + $0x8] sm:$0xff]
          %vm802 = vcmask 130048
          %v804 = vsel %vm802, %v800, 0
          %v807 = vsel %vm802, %v801, 0
          %809 = vmatprep.subr.mxu0 0.0
          %810 = vmatpush1.msra.mxu0 0.0
          %811 = vmatprep.subr.mxu0 0.0
          %812 = vmatpush1.msra.mxu0 0.0
          %813 = vmatprep.subr.mxu0 0.0
          %814 = vmatpush1.msra.mxu0 0.0
          %815 = vmatprep.subr.mxu0 0.0
          %816 = vmatpush1.msra.mxu0 0.0
          %817 = vmatprep.subr.mxu0 0.0
          %818 = vmatpush1.msra.mxu0 0.0
          %819 = vmatprep.subr.mxu0 0.0
          %820 = vmatpush1.msra.mxu0 0.0
          %821 = vmatprep.subr.mxu0 0.0
          %822 = vmatpush1.msra.mxu0 0.0
          %823 = vmatprep.subr.mxu0 0.0
          %824 = vmatpush1.msra.mxu0 0.0
          %825 = vmatprep.subr.mxu0 0.0
          %826 = vmatpush1.msra.mxu0 0.0
          %827 = vmatprep.subr.mxu0 0.0
          %828 = vmatpush1.msra.mxu0 0.0
          %829 = vmatprep.subr.mxu0 0.0
          %830 = vmatpush1.msra.mxu0 0.0
          %831 = vmatprep.subr.mxu0 0.0
          %832 = vmatpush1.msra.mxu0 0.0
          %833 = vmatprep.subr.mxu0 0.0
          %834 = vmatpush1.msra.mxu0 0.0
          %835 = vmatprep.subr.mxu0 0.0
          %836 = vmatpush1.msra.mxu0 0.0
          %837 = vmatprep.subr.mxu0 0.0
          %838 = vmatpush1.msra.mxu0 %v796
          %839 = vmatprep.subr.mxu0 0.0
          %840 = vmatpush1.msra.mxu0 %v795
          %841 = vmatprep.subr.mxu0 0.0
          %842 = vmatpush2.msra.mxu0 0.0
          %843 = vmatprep.subr.mxu0 0.0
          %844 = vmatpush2.msra.mxu0 0.0
          %845 = vmatprep.subr.mxu0 0.0
          %846 = vmatpush2.msra.mxu0 0.0
          %847 = vmatprep.subr.mxu0 0.0
          %848 = vmatpush2.msra.mxu0 0.0
          %849 = vmatprep.subr.mxu0 0.0
          %850 = vmatpush2.msra.mxu0 0.0
          %851 = vmatprep.subr.mxu0 0.0
          %852 = vmatpush2.msra.mxu0 0.0
          %853 = vmatprep.subr.mxu0 0.0
          %854 = vmatpush2.msra.mxu0 0.0
          %855 = vmatprep.subr.mxu0 0.0
          %856 = vmatpush2.msra.mxu0 0.0
          %857 = vmatprep.subr.mxu0 0.0
          %858 = vmatpush2.msra.mxu0 0.0
          %859 = vmatprep.subr.mxu0 0.0
          %860 = vmatpush2.msra.mxu0 0.0
          %861 = vmatprep.subr.mxu0 0.0
          %862 = vmatpush2.msra.mxu0 0.0
          %863 = vmatprep.subr.mxu0 0.0
          %864 = vmatpush2.msra.mxu0 0.0
          %865 = vmatprep.subr.mxu0 0.0
          %866 = vmatpush2.msra.mxu0 0.0
          %867 = vmatprep.subr.mxu0 0.0
          %868 = vmatpush2.msra.mxu0 0.0
          %869 = vmatprep.subr.mxu0 0.0
          %870 = vmatpush2.msra.mxu0 0.0
          %871 = vmatprep.subr.mxu0 0.0
          %872 = vmatpush2.msra.mxu0 0.0
          %873 = vmatprep.mubr.f32.mxu0 0.0
          %874 = vmatmul.mubr.f32.gmra.mxu0 %v804
          %v875 = vpop.f32.mrf.mxu0
          %v876 = vadd.f32 0.0, %v875
          %v877 = vpop.f32.mrf.mxu0
          %878 = vmatprep.mubr.f32.mxu0 0.0
          %879 = vmatmul.mubr.f32.gmra.mxu0 %v807
          %v880 = vpop.f32.mrf.mxu0
          %v881 = vadd.f32 0.0, %v880
          %v882 = vpop.f32.mrf.mxu0
          %883 = vdwg.mxu0
          %v884 = vld [vmem:[%s549] sm:$0xff]
          %v885 = vld [vmem:[%s549 + $0x8] sm:$0xff]
          %v886 = vld [vmem:[%s549 + $0x10] sm:$0xff]
          %v887 = vld [vmem:[%s549 + $0x18] sm:$0xff]
          %v888 = vld [vmem:[%s549 + $0x20] sm:$0xff]
          %v889 = vld [vmem:[%s549 + $0x28] sm:$0xff]
          %v890 = vld [vmem:[%s549 + $0x30] sm:$0xff]
          %v891 = vld [vmem:[%s549 + $0x38] sm:$0xff]
          %v892 = vld [vmem:[%s549 + $0x40] sm:$0xff]
          %v893 = vld [vmem:[%s549 + $0x48] sm:$0xff]
          %v894 = vld [vmem:[%s549 + $0x50] sm:$0xff]
          %v895 = vld [vmem:[%s549 + $0x58] sm:$0xff]
          %v896 = vld [vmem:[%s549 + $0x60] sm:$0xff]
          %v897 = vld [vmem:[%s549 + $0x68] sm:$0xff]
          %v898 = vld [vmem:[%s549 + $0x70] sm:$0xff]
          %v899 = vld [vmem:[%s549 + $0x78] sm:$0xff]
          %v900 = vld [vmem:[%s549 + $0x80] sm:$0xff]
          %v901 = vld [vmem:[%s549 + $0x88] sm:$0xff]
          %v902 = vld [vmem:[%s549 + $0x90] sm:$0xff]
          %v903 = vld [vmem:[%s549 + $0x98] sm:$0xff]
          %v904 = vld [vmem:[%s549 + $0xa0] sm:$0xff]
          %v905 = vld [vmem:[%s549 + $0xa8] sm:$0xff]
          %v906 = vld [vmem:[%s549 + $0xb0] sm:$0xff]
          %v907 = vld [vmem:[%s549 + $0xb8] sm:$0xff]
          %v908 = vld [vmem:[%s549 + $0xc0] sm:$0xff]
          %v909 = vld [vmem:[%s549 + $0xc8] sm:$0xff]
          %v910 = vld [vmem:[%s549 + $0xd0] sm:$0xff]
          %v911 = vld [vmem:[%s549 + $0xd8] sm:$0xff]
          %v912 = vld [vmem:[%s549 + $0xe0] sm:$0xff]
          %v913 = vld [vmem:[%s549 + $0xe8] sm:$0xff]
          %v914 = vld [vmem:[%s549 + $0xf0] sm:$0xff]
          %v915 = vld [vmem:[%s549 + $0xf8] sm:$0xff]
          %v916 = vld [vmem:[%s632] sm:$0x1]
          %v918 = vlaneseq
          %v919 = vshrl.u32 %v918, 7
          %v920 = vsub.s32 0, %v919
          %v921 = vrot.slane %v916, %v920
          %923 = vmatprep.subr.mxu0 0.0
          %924 = vmatpush1.msra.mxu0 %v899
          %925 = vmatprep.subr.mxu0 0.0
          %926 = vmatpush1.msra.mxu0 %v898
          %927 = vmatprep.subr.mxu0 0.0
          %928 = vmatpush1.msra.mxu0 %v897
          %929 = vmatprep.subr.mxu0 0.0
          %930 = vmatpush1.msra.mxu0 %v896
          %931 = vmatprep.subr.mxu0 0.0
          %932 = vmatpush1.msra.mxu0 %v895
          %933 = vmatprep.subr.mxu0 0.0
          %934 = vmatpush1.msra.mxu0 %v894
          %935 = vmatprep.subr.mxu0 0.0
          %936 = vmatpush1.msra.mxu0 %v893
          %937 = vmatprep.subr.mxu0 0.0
          %938 = vmatpush1.msra.mxu0 %v892
          %939 = vmatprep.subr.mxu0 0.0
          %940 = vmatpush1.msra.mxu0 %v891
          %941 = vmatprep.subr.mxu0 0.0
          %942 = vmatpush1.msra.mxu0 %v890
          %943 = vmatprep.subr.mxu0 0.0
          %944 = vmatpush1.msra.mxu0 %v889
          %945 = vmatprep.subr.mxu0 0.0
          %946 = vmatpush1.msra.mxu0 %v888
          %947 = vmatprep.subr.mxu0 0.0
          %948 = vmatpush1.msra.mxu0 %v887
          %949 = vmatprep.subr.mxu0 0.0
          %950 = vmatpush1.msra.mxu0 %v886
          %951 = vmatprep.subr.mxu0 0.0
          %952 = vmatpush1.msra.mxu0 %v885
          %953 = vmatprep.subr.mxu0 0.0
          %954 = vmatpush1.msra.mxu0 %v884
          %955 = vmatprep.subr.mxu0 0.0
          %956 = vmatpush2.msra.mxu0 %v915
          %957 = vmatprep.subr.mxu0 0.0
          %958 = vmatpush2.msra.mxu0 %v914
          %959 = vmatprep.subr.mxu0 0.0
          %960 = vmatpush2.msra.mxu0 %v913
          %961 = vmatprep.subr.mxu0 0.0
          %962 = vmatpush2.msra.mxu0 %v912
          %963 = vmatprep.subr.mxu0 0.0
          %964 = vmatpush2.msra.mxu0 %v911
          %965 = vmatprep.subr.mxu0 0.0
          %966 = vmatpush2.msra.mxu0 %v910
          %967 = vmatprep.subr.mxu0 0.0
          %968 = vmatpush2.msra.mxu0 %v909
          %969 = vmatprep.subr.mxu0 0.0
          %970 = vmatpush2.msra.mxu0 %v908
          %971 = vmatprep.subr.mxu0 0.0
          %972 = vmatpush2.msra.mxu0 %v907
          %973 = vmatprep.subr.mxu0 0.0
          %974 = vmatpush2.msra.mxu0 %v906
          %975 = vmatprep.subr.mxu0 0.0
          %976 = vmatpush2.msra.mxu0 %v905
          %977 = vmatprep.subr.mxu0 0.0
          %978 = vmatpush2.msra.mxu0 %v904
          %979 = vmatprep.subr.mxu0 0.0
          %980 = vmatpush2.msra.mxu0 %v903
          %981 = vmatprep.subr.mxu0 0.0
          %982 = vmatpush2.msra.mxu0 %v902
          %983 = vmatprep.subr.mxu0 0.0
          %984 = vmatpush2.msra.mxu0 %v901
          %985 = vmatprep.subr.mxu0 0.0
          %986 = vmatpush2.msra.mxu0 %v900
          %987 = vmatprep.mubr.f32.mxu0 %v798
          %988 = vmatmul.mubr.f32.gmra.mxu0 %v876
          %v989 = vpop.f32.mrf.mxu0
          %v990 = vadd.f32 %v921, %v989
          %v991 = vpop.f32.mrf.mxu0
          %992 = vmatprep.mubr.f32.mxu0 %v799
          %993 = vmatmul.mubr.f32.gmra.mxu0 %v881
          %v994 = vpop.f32.mrf.mxu0
          %v995 = vadd.f32 %v921, %v994
          %v996 = vpop.f32.mrf.mxu0
          %997 = vdwg.mxu0
          %998 = vadd.xlane.f32.xlu0 %v990
          %v999 = vpop.xlane.xlu0 %998
          %1000 = vadd.xlane.f32.xlu0 %v995
          %v1001 = vpop.xlane.xlu0 %1000
          %v1002 = vmul.f32 %v999, 0.03125
          %v1003 = vmul.f32 %v1001, 0.03125
          %v1004 = vsub.f32 %v990, %v1002
          %v1005 = vsub.f32 %v995, %v1003
          %v1006 = vlaneseq
          %v1007 = vand.u32 %v1006, 127
          %vm1008 = vcmp.lt.s32.totalorder %v1007, 32
          %v1009 = vsel %vm1008, 1, 0
          %v1010 = vcvt.s32.f32 %v1009
          %v1011 = vmul.f32 %v1004, %v1010
          %v1012 = vmul.f32 %v1005, %v1010
          %v1013 = vmul.f32 %v1011, %v1011
          %v1014 = vmul.f32 %v1012, %v1012
          %1015 = vadd.xlane.f32.xlu0 %v1013
          %v1016 = vpop.xlane.xlu0 %1015
          %1017 = vadd.xlane.f32.xlu0 %v1014
          %v1018 = vpop.xlane.xlu0 %1017
          %v1019 = vmul.f32 %v1016, 0.03125
          %v1020 = vmul.f32 %v1018, 0.03125
          %v1021 = vadd.f32 %v1019, 1e-05
          %v1022 = vadd.f32 %v1020, 1e-05
          %v1023 = vrsqrt.pop %v1021
          %v1024 = vrsqrt.pop %v1022
          %v1025 = vmul.f32 %v1011, %v1023
          %v1026 = vmul.f32 %v1012, %v1024
          %v1027 = vld [vmem:[%s641] sm:$0x1]
          %v1029 = vlaneseq
          %v1030 = vshrl.u32 %v1029, 7
          %v1031 = vsub.s32 0, %v1030
          %v1032 = vrot.slane %v1027, %v1031
          %v1034 = vmul.f32 %v1025, %v1032
          %v1035 = vmul.f32 %v1026, %v1032
          %v1036 = vld [vmem:[%s650] sm:$0x1]
          %v1038 = vlaneseq
          %v1039 = vshrl.u32 %v1038, 7
          %v1040 = vsub.s32 0, %v1039
          %v1041 = vrot.slane %v1036, %v1040
          %v1043 = vadd.f32 %v1034, %v1041
          %v1044 = vadd.f32 %v1035, %v1041
          %p1045 = scmp.ge.s32.totalorder %s40, 2
          %p1046 = scmp.eq.s32.totalorder %s789, 0
          %p1047 = pnand %p1045, %p1046
          %p1048 = pneg %p1047
          %s1049 = scalar_lea.vmem [#allocation3], %s660
          %v1050 = vld [vmem:[%s1049] sm:$0xff]
          %v1051 = vld [vmem:[%s1049 + $0x8] sm:$0xff]
          %s1052 = scalar_select %p1048, 1, 0
          %v1053 = vstv %s1052
          %vm1054 = vcmp.eq.s32.totalorder %v1053, 1
          %v1055 = vsel %vm1054, %v1050, 0.0
          %v1056 = vsel %vm1054, %v1051, 0.0
          %v1057 = vadd.f32 %v1043, %v1055
          %v1058 = vadd.f32 %v1044, %v1056
          %v1059 = vmax.f32 %v1057, 0.0
          %v1060 = vmax.f32 %v1058, 0.0
          // Predicated region
          $region89: #{tpu_custom_call.1} parent=87 // pred_check
            _
          $region90: #{tpu_custom_call.1} parent=87 // pred_check_branch
            %1062 = sbr.rel (%p1047) target = $region92
          $region91: #{tpu_custom_call.1} parent=87 // pred_region
            %1063 = vst [vmem:[%s1049] sm:$0xff] %v1059
            %1064 = vst [vmem:[%s1049 + $0x8] sm:$0xff] %v1060
          $region92: #{tpu_custom_call.1} parent=87 // pred_fallthru
            _
          %s1065 = scalar_lea.vmem [#allocation2], %s793
          %1066 = vst [vmem:[%s1065] sm:$0xff] %v1059
          %1067 = vst [vmem:[%s1065 + $0x8] sm:$0xff] %v1060
          %p1068 = scmp.eq.s32.totalorder %s40, 2
          // Predicated region
          $region93: #{tpu_custom_call.1} parent=87 // pred_check
            %p1069 = pneg %p1068
          $region94: #{tpu_custom_call.1} parent=87 // pred_check_branch
            %1071 = sbr.rel (%p1069) target = $region96
          $region95: #{tpu_custom_call.1} parent=87 // pred_region
            %1072 = vst [vmem:[%s612] sm:$0xff] %v1059
            %1073 = vst [vmem:[%s612 + $0x8] sm:$0xff] %v1060
            %v1074 = vld [vmem:[#allocation12] sm:$0xff]
            %v1075 = vld [vmem:[#allocation12 + $0x8] sm:$0xff]
            %v1076 = vld [vmem:[#allocation12 + $0x10] sm:$0xff]
            %v1077 = vld [vmem:[#allocation12 + $0x18] sm:$0xff]
            %v1078 = vld [vmem:[#allocation12 + $0x20] sm:$0xff]
            %v1079 = vld [vmem:[#allocation12 + $0x28] sm:$0xff]
            %v1080 = vld [vmem:[#allocation12 + $0x30] sm:$0xff]
            %v1081 = vld [vmem:[#allocation12 + $0x38] sm:$0xff]
            %v1082 = vld [vmem:[#allocation12 + $0x40] sm:$0xff]
            %v1083 = vld [vmem:[#allocation12 + $0x48] sm:$0xff]
            %v1084 = vld [vmem:[#allocation12 + $0x50] sm:$0xff]
            %v1085 = vld [vmem:[#allocation12 + $0x58] sm:$0xff]
            %v1086 = vld [vmem:[#allocation12 + $0x60] sm:$0xff]
            %v1087 = vld [vmem:[#allocation12 + $0x68] sm:$0xff]
            %v1088 = vld [vmem:[#allocation12 + $0x70] sm:$0xff]
            %v1089 = vld [vmem:[#allocation12 + $0x78] sm:$0xff]
            %v1090 = vld [vmem:[%s9] sm:$0x1]
            %v1092 = vlaneseq
            %v1093 = vshrl.u32 %v1092, 7
            %v1094 = vsub.s32 0, %v1093
            %v1095 = vrot.slane %v1090, %v1094
            %1097 = vmatprep.subr.mxu0 0.0
            %1098 = vmatpush1.msra.mxu0 %v1089
            %1099 = vmatprep.subr.mxu0 0.0
            %1100 = vmatpush1.msra.mxu0 %v1088
            %1101 = vmatprep.subr.mxu0 0.0
            %1102 = vmatpush1.msra.mxu0 %v1087
            %1103 = vmatprep.subr.mxu0 0.0
            %1104 = vmatpush1.msra.mxu0 %v1086
            %1105 = vmatprep.subr.mxu0 0.0
            %1106 = vmatpush1.msra.mxu0 %v1085
            %1107 = vmatprep.subr.mxu0 0.0
            %1108 = vmatpush1.msra.mxu0 %v1084
            %1109 = vmatprep.subr.mxu0 0.0
            %1110 = vmatpush1.msra.mxu0 %v1083
            %1111 = vmatprep.subr.mxu0 0.0
            %1112 = vmatpush1.msra.mxu0 %v1082
            %1113 = vmatprep.subr.mxu0 0.0
            %1114 = vmatpush1.msra.mxu0 %v1081
            %1115 = vmatprep.subr.mxu0 0.0
            %1116 = vmatpush1.msra.mxu0 %v1080
            %1117 = vmatprep.subr.mxu0 0.0
            %1118 = vmatpush1.msra.mxu0 %v1079
            %1119 = vmatprep.subr.mxu0 0.0
            %1120 = vmatpush1.msra.mxu0 %v1078
            %1121 = vmatprep.subr.mxu0 0.0
            %1122 = vmatpush1.msra.mxu0 %v1077
            %1123 = vmatprep.subr.mxu0 0.0
            %1124 = vmatpush1.msra.mxu0 %v1076
            %1125 = vmatprep.subr.mxu0 0.0
            %1126 = vmatpush1.msra.mxu0 %v1075
            %1127 = vmatprep.subr.mxu0 0.0
            %1128 = vmatpush1.msra.mxu0 %v1074
            %1129 = vmatprep.subr.mxu0 0.0
            %1130 = vmatpush2.msra.mxu0 0.0
            %1131 = vmatprep.subr.mxu0 0.0
            %1132 = vmatpush2.msra.mxu0 0.0
            %1133 = vmatprep.subr.mxu0 0.0
            %1134 = vmatpush2.msra.mxu0 0.0
            %1135 = vmatprep.subr.mxu0 0.0
            %1136 = vmatpush2.msra.mxu0 0.0
            %1137 = vmatprep.subr.mxu0 0.0
            %1138 = vmatpush2.msra.mxu0 0.0
            %1139 = vmatprep.subr.mxu0 0.0
            %1140 = vmatpush2.msra.mxu0 0.0
            %1141 = vmatprep.subr.mxu0 0.0
            %1142 = vmatpush2.msra.mxu0 0.0
            %1143 = vmatprep.subr.mxu0 0.0
            %1144 = vmatpush2.msra.mxu0 0.0
            %1145 = vmatprep.subr.mxu0 0.0
            %1146 = vmatpush2.msra.mxu0 0.0
            %1147 = vmatprep.subr.mxu0 0.0
            %1148 = vmatpush2.msra.mxu0 0.0
            %1149 = vmatprep.subr.mxu0 0.0
            %1150 = vmatpush2.msra.mxu0 0.0
            %1151 = vmatprep.subr.mxu0 0.0
            %1152 = vmatpush2.msra.mxu0 0.0
            %1153 = vmatprep.subr.mxu0 0.0
            %1154 = vmatpush2.msra.mxu0 0.0
            %1155 = vmatprep.subr.mxu0 0.0
            %1156 = vmatpush2.msra.mxu0 0.0
            %1157 = vmatprep.subr.mxu0 0.0
            %1158 = vmatpush2.msra.mxu0 0.0
            %1159 = vmatprep.subr.mxu0 0.0
            %1160 = vmatpush2.msra.mxu0 0.0
            %1161 = vmatprep.mubr.f32.mxu0 0.0
            %1162 = vmatmul.mubr.f32.gmra.mxu0 %v1059
            %v1163 = vpop.f32.mrf.mxu0
            %v1164 = vadd.f32 %v1095, %v1163
            %v1165 = vpop.f32.mrf.mxu0
            %1166 = vmatprep.mubr.f32.mxu0 0.0
            %1167 = vmatmul.mubr.f32.gmra.mxu0 %v1060
            %v1168 = vpop.f32.mrf.mxu0
            %v1169 = vadd.f32 %v1095, %v1168
            %v1170 = vpop.f32.mrf.mxu0
            %1171 = vdwg.mxu0
            %1172 = vst [vmem:[%s619] sm:$0xff] %v1164
            %1173 = vst [vmem:[%s619 + $0x8] sm:$0xff] %v1169
          $region96: #{tpu_custom_call.1} parent=87 // pred_fallthru
            _
        $region88: #{tpu_custom_call.1} parent=59 // pred_fallthru
          _
        %s1174 = sand.u32 %s328, 1
        %s1175 = scalar_lea.sflag [#allocation6], %s1174
        %s1176 = sand.u32 %s328, 1
        %s1177 = smul.addr %s1176, 16
        %s1178 = scalar_lea.vmem [#allocation13], %s1177
        %s1179 = sand.u32 %s358, 1
        %s1180 = scalar_lea.sflag [#allocation15], %s1179
        %s1181 = sand.u32 %s358, 1
        %s1182 = smul.addr %s1181, 16
        %s1183 = scalar_lea.vmem [#allocation14], %s1182
        // Predicated region
        $region97: #{tpu_custom_call.1} parent=59 // pred_check
          %p1184 = pneg %p338
        $region98: #{tpu_custom_call.1} parent=59 // pred_check_branch
          %1186 = sbr.rel (%p1184) target = $region100
        $region99: #{tpu_custom_call.1} parent=59 // pred_region
          %p1187 = scmp.eq.s32.totalorder %s40, 2
          %s1188 = scalar_select %p1187, %s41, 0
          %s1189 = smul.u32 2, %s1188
          %s1191 = ssub.s32 256, 256
          %1192 = vsyncadd %s1175, %s1191
          %s1193 = smul.addr %s1189, 128
          %s1194 = scalar_lea.hbm %s10, %s1193
          %s1195 = sshll.u32 %s1178, 4
          %s1196 = int_to_ptr.vmem [resolvable:$true] %s1195
          %1201 = dma.vmem_to_hbm [thread:$0]  %s1196, 256, %s1194, %s1175, 128, 128, 8
        $region100: #{tpu_custom_call.1} parent=59 // pred_fallthru
          _
        // Predicated region
        $region101: #{tpu_custom_call.1} parent=59 // pred_check
          %p1202 = pneg %p368
        $region102: #{tpu_custom_call.1} parent=59 // pred_check_branch
          %1204 = sbr.rel (%p1202) target = $region104
        $region103: #{tpu_custom_call.1} parent=59 // pred_region
          %p1205 = scmp.eq.s32.totalorder %s40, 2
          %s1206 = scalar_select %p1205, %s41, 0
          %s1207 = smul.u32 2, %s1206
          %s1209 = ssub.s32 256, 256
          %1210 = vsyncadd %s1180, %s1209
          %s1211 = smul.addr %s1207, 128
          %s1212 = scalar_lea.hbm %s11, %s1211
          %s1213 = sshll.u32 %s1183, 4
          %s1214 = int_to_ptr.vmem [resolvable:$true] %s1213
          %1219 = dma.vmem_to_hbm [thread:$0]  %s1214, 256, %s1212, %s1180, 128, 128, 8
        $region104: #{tpu_custom_call.1} parent=59 // pred_fallthru
          _
      $region60: #{tpu_custom_call.1} parent=5 // pred_fallthru
        _
      %p1220 = scmp.le.s32.totalorder 2, %s31
      // Predicated region
      $region105: #{tpu_custom_call.1} parent=5 // pred_check
        %p1221 = pneg %p1220
      $region106: #{tpu_custom_call.1} parent=5 // pred_check_branch
        %1223 = sbr.rel (%p1221) target = $region108
      $region107: #{tpu_custom_call.1} parent=5 // pred_region
        %s1224 = ssub.s32 %s31, 2
        // Predicated region
        $region109: #{tpu_custom_call.1} parent=107 // pred_check
          %p1225 = pneg %p344
        $region110: #{tpu_custom_call.1} parent=107 // pred_check_branch
          %1227 = sbr.rel (%p1225) target = $region112
        $region111: #{tpu_custom_call.1} parent=107 // pred_region
          %s1228 = sand.u32 %s329, 1
          %s1229 = scalar_lea.sflag [#allocation6], %s1228
          %s1230 = sand.u32 %s329, 1
          %s1231 = smul.addr %s1230, 16
          %s1232 = scalar_lea.vmem [#allocation13], %s1231
          %1233 = dma.done %s1229, 256
        $region112: #{tpu_custom_call.1} parent=107 // pred_fallthru
          _
        // Predicated region
        $region113: #{tpu_custom_call.1} parent=107 // pred_check
          %p1234 = pneg %p374
        $region114: #{tpu_custom_call.1} parent=107 // pred_check_branch
          %1236 = sbr.rel (%p1234) target = $region116
        $region115: #{tpu_custom_call.1} parent=107 // pred_region
          %s1237 = sand.u32 %s359, 1
          %s1238 = scalar_lea.sflag [#allocation15], %s1237
          %s1239 = sand.u32 %s359, 1
          %s1240 = smul.addr %s1239, 16
          %s1241 = scalar_lea.vmem [#allocation14], %s1240
          %1242 = dma.done %s1238, 256
        $region116: #{tpu_custom_call.1} parent=107 // pred_fallthru
          _
      $region108: #{tpu_custom_call.1} parent=5 // pred_fallthru
        _
    $region6: #{tpu_custom_call.1} parent=1 // loop_footer
      %s35 = sadd.s32 1, %s31
    $region7: #{tpu_custom_call.1} parent=1 // loop_footer_branch
      %30 = sbr.rel target = $region3
    $region8: #{tpu_custom_call.1} parent=1 // loop_exit
      _
    %1243 = vsyncpa [#allocation5], 1
    %s1244 = scalar_lea.sflag [#allocation5], 1
    %1245 = vsyncpa %s1244, 1
    %1246 = vsyncpa [#allocation8], 1
    %1247 = vsyncpa [#allocation11], 1
    %s1248 = scalar_lea.sflag [#allocation11], 1
    %1249 = vsyncpa %s1248, 1
    %1250 = vsyncpa [#allocation6], 1
    %s1251 = scalar_lea.sflag [#allocation6], 1
    %1252 = vsyncpa %s1251, 1
    %1253 = vsyncpa [#allocation15], 1
    %s1254 = scalar_lea.sflag [#allocation15], 1
    %1255 = vsyncpa %s1254, 1

</llo_original>
